<compile_context>
chip_gen: v7x
topology: tpu7x:2x2x1
jax: 0.10.0
libtpu: 0.0.40
codegen_flags: <defaults>
</compile_context>

<pallas_src>
import functools

import jax
import jax.numpy as jnp
from jax.experimental import pallas as pl
from jax.experimental.pallas import tpu as pltpu


def _attention_kernel(x_ref, wqkv_ref, wproj_ref, bproj_ref, o_ref, *,
                      num_heads, approx_recip):
    # One grid step handles a block of Bt batch elements, ALL heads.
    #   x_ref:     (Bt, N, C)   activations (compute dtype, e.g. bf16)
    #   wqkv_ref:  (C, 3C)      fused [Q | K | V] weight, scale folded into Q
    #   wproj_ref: (C, C)       output projection weight (x @ W layout)
    #   bproj_ref: (1, C)       output projection bias (f32)
    #   o_ref:     (Bt, N, C)   output block
    bt, n, c = x_ref.shape
    h = num_heads
    d = c // h
    cdt = x_ref.dtype

    # --- fused QKV projection: one MXU matmul contracting over full C ------
    x2 = x_ref[...].reshape(bt * n, c)                               # safe merge of leading dims
    qkv = jnp.dot(x2, wqkv_ref[...],
                  preferred_element_type=jnp.float32)                # (Bt*N, 3C) f32
    qkv = qkv.reshape(bt, n, 3 * c)                                  # safe split of leading dim

    # --- per-head attention (statically unrolled; batched over Bt) ---------
    ctx_heads = []
    for i in range(h):
        q_h = qkv[:, :, i * d:(i + 1) * d].astype(cdt)               # (Bt, N, d)
        k_h = qkv[:, :, c + i * d:c + (i + 1) * d].astype(cdt)
        v_h = qkv[:, :, 2 * c + i * d:2 * c + (i + 1) * d].astype(cdt)

        # scores: single-batch-dim dot_general, contraction over d, f32 acc
        s = jnp.einsum('bnd,bmd->bnm', q_h, k_h,
                       preferred_element_type=jnp.float32)           # (Bt, N, N) f32

        # numerically-stable softmax, all vector math in f32 (v5e-safe)
        m = jnp.max(s, axis=-1, keepdims=True)
        e = jnp.exp(s - m)
        den = jnp.sum(e, axis=-1, keepdims=True)
        p = (e * pl.reciprocal(den, approx=approx_recip)).astype(cdt)

        ctx_heads.append(
            jnp.einsum('bnm,bmd->bnd', p, v_h,
                       preferred_element_type=jnp.float32))          # (Bt, N, d) f32

    # --- reassemble heads along lanes, ONE C-contraction output projection -
    ctx = jnp.concatenate(ctx_heads, axis=-1)                        # (Bt, N, C) f32
    ctx = ctx.astype(cdt).reshape(bt * n, c)
    out = jnp.dot(ctx, wproj_ref[...],
                  preferred_element_type=jnp.float32)                # (Bt*N, C) f32
    out = out + bproj_ref[...].astype(jnp.float32)
    o_ref[...] = out.reshape(bt, n, c).astype(o_ref.dtype)


def prepare_attention_params(w_qkv, w_proj, b_proj, *, num_heads, scale,
                             compute_dtype=jnp.bfloat16):
    """One-time repack of PyTorch nn.Linear weights (hoisted off the fwd path).

    w_qkv: (3C, C), w_proj: (C, C), b_proj: (C,)   (PyTorch (out, in) layout)
    Returns:
      wqkv:  (C, 3C)  fused [Q | K | V] columns for x @ W; softmax scale folded into Q
      wproj: (C, C)   output projection for x @ W
      bias:  (1, C)   f32
    """
    three_c, c = w_qkv.shape
    assert three_c == 3 * c, "qkv weight must be (3*dim, dim)"
    assert c % num_heads == 0, "dim must be divisible by num_heads"

    wqkv_t = jnp.transpose(w_qkv)                       # (C, 3C): x @ W layout
    wqkv_t = wqkv_t.at[:, :c].multiply(scale)           # fold softmax scale into Q cols
    wproj_t = jnp.transpose(w_proj)                     # (C, C)
    return (wqkv_t.astype(compute_dtype),
            wproj_t.astype(compute_dtype),
            b_proj.reshape(1, c).astype(jnp.float32))


def attention_forward(x, wqkv, wproj, bias2d, *, num_heads, block_b=None,
                      compute_dtype=jnp.bfloat16, approx_recip=True,
                      vmem_limit_bytes=32 * 1024 * 1024):
    """x: (B, N, C).  Weights pre-packed by prepare_attention_params.

    vmem_limit_bytes defaults to 32 MiB (safe on v7x's 64 MiB/TC VMEM); on
    v5e/v6e (128 MiB VMEM) it can be raised and block_b increased accordingly.
    """
    B, N, C = x.shape
    assert C % num_heads == 0, "dim must be divisible by num_heads"
    itemsize = jnp.dtype(compute_dtype).itemsize

    if block_b is None:
        # Rough per-batch-element working set for one in-flight block:
        #   x + out blocks (double buffered), f32 fused qkv intermediate,
        #   a couple of live per-head f32 score tiles, ctx reassembly.
        per_b = (4 * N * C * itemsize          # x + out, double buffered
                 + 4 * N * 3 * C               # fused qkv (f32)
                 + 2 * N * N * 4               # live score / softmax temps (f32)
                 + N * C * (4 + itemsize))     # ctx assembly (f32 + compute dtype)
        budget = vmem_limit_bytes // 2         # headroom for resident weights + scratch
        block_b = max(1, int(budget // per_b))
    block_b = int(min(block_b, B))
    if B >= 2:
        # keep >= 2 grid steps so the "parallel" axis feeds both v7x TensorCores
        block_b = min(block_b, -(-B // 2))
    block_b = max(block_b, 1)
    nb = pl.cdiv(B, block_b)

    x_c = x.astype(compute_dtype)
    kernel = functools.partial(_attention_kernel, num_heads=num_heads,
                               approx_recip=approx_recip)

    return pl.pallas_call(
        kernel,
        out_shape=jax.ShapeDtypeStruct((B, N, C), x.dtype),
        grid_spec=pltpu.PrefetchScalarGridSpec(
            num_scalar_prefetch=0,
            grid=(nb,),                                             # batch blocks only
            in_specs=[
                pl.BlockSpec((block_b, N, C), lambda i: (i, 0, 0)),  # activations
                pl.BlockSpec((C, 3 * C), lambda i: (0, 0)),          # qkv weight (VMEM-resident)
                pl.BlockSpec((C, C), lambda i: (0, 0)),              # proj weight (VMEM-resident)
                pl.BlockSpec((1, C), lambda i: (0, 0)),              # proj bias (VMEM-resident)
            ],
            out_specs=pl.BlockSpec((block_b, N, C), lambda i: (i, 0, 0)),
        ),
        compiler_params=pltpu.CompilerParams(
            dimension_semantics=("parallel",),
            vmem_limit_bytes=vmem_limit_bytes,
        ),
    )(x_c, wqkv, wproj, bias2d)


def _reference(x, w_qkv, w_proj, b_proj, num_heads, scale):
    B, N, C = x.shape
    d = C // num_heads
    qkv = jnp.einsum("bnc,oc->bno", x, w_qkv)                       # (B, N, 3C)
    qkv = qkv.reshape(B, N, 3, num_heads, d).transpose(2, 0, 3, 1, 4)
    q, k, v = qkv[0], qkv[1], qkv[2]                                # (B, H, N, d)
    attn = jnp.einsum("bhnd,bhmd->bhnm", q, k) * scale
    attn = jax.nn.softmax(attn, axis=-1)
    ctx = jnp.einsum("bhnm,bhmd->bhnd", attn, v)                    # (B, H, N, d)
    ctx = ctx.transpose(0, 2, 1, 3).reshape(B, N, C)
    return jnp.einsum("bnc,oc->bno", ctx, w_proj) + b_proj


if __name__ == "__main__":
    B, N, C = 2, 16, 32
    num_heads = 8
    head_dim = C // num_heads
    scale = head_dim ** (-0.5)

    key = jax.random.PRNGKey(0)
    kx, kq, kp, kb = jax.random.split(key, 4)
    x = jax.random.normal(kx, (B, N, C), dtype=jnp.float32)
    # qkv_bias=False in the module, so no qkv bias
    w_qkv = jax.random.normal(kq, (3 * C, C), dtype=jnp.float32) * 0.05
    w_proj = jax.random.normal(kp, (C, C), dtype=jnp.float32) * 0.05
    b_proj = jax.random.normal(kb, (C,), dtype=jnp.float32) * 0.05

    # one-time parameter repack (transposes / scale folding hoisted off the fwd path)
    wqkv_p, wproj_p, bias2d = prepare_attention_params(
        w_qkv, w_proj, b_proj, num_heads=num_heads, scale=scale,
        compute_dtype=jnp.bfloat16)

    out = attention_forward(x, wqkv_p, wproj_p, bias2d, num_heads=num_heads,
                            compute_dtype=jnp.bfloat16)
    out = jax.block_until_ready(out)

    ref = _reference(x, w_qkv, w_proj, b_proj, num_heads, scale)
    assert out.shape == (B, N, C)
    # bf16 MXU operands (f32 accumulation) + approx reciprocal -> relaxed tolerance;
    # pass approx_recip=False for bit-closer softmax normalization if required.
    assert jnp.allclose(out, ref, atol=2e-2, rtol=2e-2), "mismatch vs reference"

    print("KERNEL_OK")
</pallas_src>

<mosaic_0001>
module attributes {stable_mosaic.version = 11 : i64} {
  func.func @_attention_kernel(%arg0: i32, %arg1: memref<1x16x32xbf16, #tpu.memory_space<vmem>>, %arg2: memref<32x96xbf16, #tpu.memory_space<vmem>>, %arg3: memref<32x32xbf16, #tpu.memory_space<vmem>>, %arg4: memref<1x32xf32, #tpu.memory_space<vmem>>, %arg5: memref<1x16x32xf32, #tpu.memory_space<vmem>>) attributes {dimension_semantics = [#tpu.dimension_semantics<parallel>], iteration_bounds = array<i64: 2>, scalar_prefetch = 0 : i64, scratch_operands = 0 : i64, tpu.core_type = #tpu.core_type<tc>, window_params = [{transform_indices = @transform_0, window_bounds = array<i64: 1, 16, 32>}, {pipeline_mode = #tpu.pipeline_mode<synchronous>, transform_indices = @transform_1, window_bounds = array<i64: 32, 96>}, {pipeline_mode = #tpu.pipeline_mode<synchronous>, transform_indices = @transform_2, window_bounds = array<i64: 32, 32>}, {pipeline_mode = #tpu.pipeline_mode<synchronous>, transform_indices = @transform_3, window_bounds = array<i64: 1, 32>}, {transform_indices = @transform_4, window_bounds = array<i64: 1, 16, 32>}]} {
    %c0 = arith.constant 0 : index
    %c0_0 = arith.constant 0 : index
    %c0_1 = arith.constant 0 : index
    %0 = vector.load %arg1[%c0, %c0_0, %c0_1] : memref<1x16x32xbf16, #tpu.memory_space<vmem>>, vector<1x16x32xbf16>
    %1 = vector.shape_cast %0 : vector<1x16x32xbf16> to vector<16x32xbf16>
    %c0_2 = arith.constant 0 : index
    %c0_3 = arith.constant 0 : index
    %2 = vector.load %arg2[%c0_2, %c0_3] : memref<32x96xbf16, #tpu.memory_space<vmem>>, vector<32x96xbf16>
    %cst = arith.constant dense<0.000000e+00> : vector<16x96xf32>
    %3 = tpu.matmul %1, %2, %cst {dimension_numbers = #tpu.dot_dimension_numbers<[1], [0], [0], [1], [0, 0, 1, 1], [], []>} : vector<16x32xbf16>, vector<32x96xbf16>, vector<16x96xf32> -> vector<16x96xf32>
    %4 = vector.shape_cast %3 : vector<16x96xf32> to vector<1x16x96xf32>
    %5 = vector.extract_strided_slice %4 {offsets = [0, 0, 0], sizes = [1, 16, 4], strides = [1, 1, 1]} : vector<1x16x96xf32> to vector<1x16x4xf32>
    %6 = arith.truncf %5 : vector<1x16x4xf32> to vector<1x16x4xbf16>
    %7 = vector.extract_strided_slice %4 {offsets = [0, 0, 32], sizes = [1, 16, 4], strides = [1, 1, 1]} : vector<1x16x96xf32> to vector<1x16x4xf32>
    %8 = arith.truncf %7 : vector<1x16x4xf32> to vector<1x16x4xbf16>
    %9 = vector.extract_strided_slice %4 {offsets = [0, 0, 64], sizes = [1, 16, 4], strides = [1, 1, 1]} : vector<1x16x96xf32> to vector<1x16x4xf32>
    %10 = arith.truncf %9 : vector<1x16x4xf32> to vector<1x16x4xbf16>
    "tpu.trace_start"() <{level = 10 : i32, message = "bnd,bmd->bnm"}> : () -> ()
    %cst_4 = arith.constant dense<0.000000e+00> : vector<1x16x16xf32>
    %11 = tpu.matmul %6, %8, %cst_4 {dimension_numbers = #tpu.dot_dimension_numbers<[2], [2], [1], [1], [0, 0, 0, 1, 1, 1], [0], [0]>} : vector<1x16x4xbf16>, vector<1x16x4xbf16>, vector<1x16x16xf32> -> vector<1x16x16xf32>
    "tpu.trace_stop"() : () -> ()
    %cst_5 = arith.constant dense<0xFF800000> : vector<1x16xf32>
    %12 = vector.multi_reduction <maximumf>, %11, %cst_5 [2] : vector<1x16x16xf32> to vector<1x16xf32>
    %13 = vector.shape_cast %12 : vector<1x16xf32> to vector<1x16x1xf32>
    %14 = vector.broadcast %13 : vector<1x16x1xf32> to vector<1x16x16xf32>
    %15 = arith.subf %11, %14 : vector<1x16x16xf32>
    %16 = math.exp %15 : vector<1x16x16xf32>
    %cst_6 = arith.constant dense<0.000000e+00> : vector<1x16xf32>
    %17 = vector.multi_reduction <add>, %16, %cst_6 [2] : vector<1x16x16xf32> to vector<1x16xf32>
    %18 = vector.shape_cast %17 : vector<1x16xf32> to vector<1x16x1xf32>
    %19 = tpu.reciprocal %18 {approx = true} : vector<1x16x1xf32> -> vector<1x16x1xf32>
    %20 = vector.broadcast %19 : vector<1x16x1xf32> to vector<1x16x16xf32>
    %21 = arith.mulf %16, %20 : vector<1x16x16xf32>
    %22 = arith.truncf %21 : vector<1x16x16xf32> to vector<1x16x16xbf16>
    "tpu.trace_start"() <{level = 10 : i32, message = "bnm,bmd->bnd"}> : () -> ()
    %cst_7 = arith.constant dense<0.000000e+00> : vector<1x16x4xf32>
    %23 = tpu.matmul %22, %10, %cst_7 {dimension_numbers = #tpu.dot_dimension_numbers<[2], [1], [1], [2], [0, 0, 0, 1, 1, 2], [0], [0]>} : vector<1x16x16xbf16>, vector<1x16x4xbf16>, vector<1x16x4xf32> -> vector<1x16x4xf32>
    "tpu.trace_stop"() : () -> ()
    %24 = vector.extract_strided_slice %4 {offsets = [0, 0, 4], sizes = [1, 16, 4], strides = [1, 1, 1]} : vector<1x16x96xf32> to vector<1x16x4xf32>
    %25 = arith.truncf %24 : vector<1x16x4xf32> to vector<1x16x4xbf16>
    %26 = vector.extract_strided_slice %4 {offsets = [0, 0, 36], sizes = [1, 16, 4], strides = [1, 1, 1]} : vector<1x16x96xf32> to vector<1x16x4xf32>
    %27 = arith.truncf %26 : vector<1x16x4xf32> to vector<1x16x4xbf16>
    %28 = vector.extract_strided_slice %4 {offsets = [0, 0, 68], sizes = [1, 16, 4], strides = [1, 1, 1]} : vector<1x16x96xf32> to vector<1x16x4xf32>
    %29 = arith.truncf %28 : vector<1x16x4xf32> to vector<1x16x4xbf16>
    "tpu.trace_start"() <{level = 10 : i32, message = "bnd,bmd->bnm"}> : () -> ()
    %cst_8 = arith.constant dense<0.000000e+00> : vector<1x16x16xf32>
    %30 = tpu.matmul %25, %27, %cst_8 {dimension_numbers = #tpu.dot_dimension_numbers<[2], [2], [1], [1], [0, 0, 0, 1, 1, 1], [0], [0]>} : vector<1x16x4xbf16>, vector<1x16x4xbf16>, vector<1x16x16xf32> -> vector<1x16x16xf32>
    "tpu.trace_stop"() : () -> ()
    %cst_9 = arith.constant dense<0xFF800000> : vector<1x16xf32>
    %31 = vector.multi_reduction <maximumf>, %30, %cst_9 [2] : vector<1x16x16xf32> to vector<1x16xf32>
    %32 = vector.shape_cast %31 : vector<1x16xf32> to vector<1x16x1xf32>
    %33 = vector.broadcast %32 : vector<1x16x1xf32> to vector<1x16x16xf32>
    %34 = arith.subf %30, %33 : vector<1x16x16xf32>
    %35 = math.exp %34 : vector<1x16x16xf32>
    %cst_10 = arith.constant dense<0.000000e+00> : vector<1x16xf32>
    %36 = vector.multi_reduction <add>, %35, %cst_10 [2] : vector<1x16x16xf32> to vector<1x16xf32>
    %37 = vector.shape_cast %36 : vector<1x16xf32> to vector<1x16x1xf32>
    %38 = tpu.reciprocal %37 {approx = true} : vector<1x16x1xf32> -> vector<1x16x1xf32>
    %39 = vector.broadcast %38 : vector<1x16x1xf32> to vector<1x16x16xf32>
    %40 = arith.mulf %35, %39 : vector<1x16x16xf32>
    %41 = arith.truncf %40 : vector<1x16x16xf32> to vector<1x16x16xbf16>
    "tpu.trace_start"() <{level = 10 : i32, message = "bnm,bmd->bnd"}> : () -> ()
    %cst_11 = arith.constant dense<0.000000e+00> : vector<1x16x4xf32>
    %42 = tpu.matmul %41, %29, %cst_11 {dimension_numbers = #tpu.dot_dimension_numbers<[2], [1], [1], [2], [0, 0, 0, 1, 1, 2], [0], [0]>} : vector<1x16x16xbf16>, vector<1x16x4xbf16>, vector<1x16x4xf32> -> vector<1x16x4xf32>
    "tpu.trace_stop"() : () -> ()
    %43 = vector.extract_strided_slice %4 {offsets = [0, 0, 8], sizes = [1, 16, 4], strides = [1, 1, 1]} : vector<1x16x96xf32> to vector<1x16x4xf32>
    %44 = arith.truncf %43 : vector<1x16x4xf32> to vector<1x16x4xbf16>
    %45 = vector.extract_strided_slice %4 {offsets = [0, 0, 40], sizes = [1, 16, 4], strides = [1, 1, 1]} : vector<1x16x96xf32> to vector<1x16x4xf32>
    %46 = arith.truncf %45 : vector<1x16x4xf32> to vector<1x16x4xbf16>
    %47 = vector.extract_strided_slice %4 {offsets = [0, 0, 72], sizes = [1, 16, 4], strides = [1, 1, 1]} : vector<1x16x96xf32> to vector<1x16x4xf32>
    %48 = arith.truncf %47 : vector<1x16x4xf32> to vector<1x16x4xbf16>
    "tpu.trace_start"() <{level = 10 : i32, message = "bnd,bmd->bnm"}> : () -> ()
    %cst_12 = arith.constant dense<0.000000e+00> : vector<1x16x16xf32>
    %49 = tpu.matmul %44, %46, %cst_12 {dimension_numbers = #tpu.dot_dimension_numbers<[2], [2], [1], [1], [0, 0, 0, 1, 1, 1], [0], [0]>} : vector<1x16x4xbf16>, vector<1x16x4xbf16>, vector<1x16x16xf32> -> vector<1x16x16xf32>
    "tpu.trace_stop"() : () -> ()
    %cst_13 = arith.constant dense<0xFF800000> : vector<1x16xf32>
    %50 = vector.multi_reduction <maximumf>, %49, %cst_13 [2] : vector<1x16x16xf32> to vector<1x16xf32>
    %51 = vector.shape_cast %50 : vector<1x16xf32> to vector<1x16x1xf32>
    %52 = vector.broadcast %51 : vector<1x16x1xf32> to vector<1x16x16xf32>
    %53 = arith.subf %49, %52 : vector<1x16x16xf32>
    %54 = math.exp %53 : vector<1x16x16xf32>
    %cst_14 = arith.constant dense<0.000000e+00> : vector<1x16xf32>
    %55 = vector.multi_reduction <add>, %54, %cst_14 [2] : vector<1x16x16xf32> to vector<1x16xf32>
    %56 = vector.shape_cast %55 : vector<1x16xf32> to vector<1x16x1xf32>
    %57 = tpu.reciprocal %56 {approx = true} : vector<1x16x1xf32> -> vector<1x16x1xf32>
    %58 = vector.broadcast %57 : vector<1x16x1xf32> to vector<1x16x16xf32>
    %59 = arith.mulf %54, %58 : vector<1x16x16xf32>
    %60 = arith.truncf %59 : vector<1x16x16xf32> to vector<1x16x16xbf16>
    "tpu.trace_start"() <{level = 10 : i32, message = "bnm,bmd->bnd"}> : () -> ()
    %cst_15 = arith.constant dense<0.000000e+00> : vector<1x16x4xf32>
    %61 = tpu.matmul %60, %48, %cst_15 {dimension_numbers = #tpu.dot_dimension_numbers<[2], [1], [1], [2], [0, 0, 0, 1, 1, 2], [0], [0]>} : vector<1x16x16xbf16>, vector<1x16x4xbf16>, vector<1x16x4xf32> -> vector<1x16x4xf32>
    "tpu.trace_stop"() : () -> ()
    %62 = vector.extract_strided_slice %4 {offsets = [0, 0, 12], sizes = [1, 16, 4], strides = [1, 1, 1]} : vector<1x16x96xf32> to vector<1x16x4xf32>
    %63 = arith.truncf %62 : vector<1x16x4xf32> to vector<1x16x4xbf16>
    %64 = vector.extract_strided_slice %4 {offsets = [0, 0, 44], sizes = [1, 16, 4], strides = [1, 1, 1]} : vector<1x16x96xf32> to vector<1x16x4xf32>
    %65 = arith.truncf %64 : vector<1x16x4xf32> to vector<1x16x4xbf16>
    %66 = vector.extract_strided_slice %4 {offsets = [0, 0, 76], sizes = [1, 16, 4], strides = [1, 1, 1]} : vector<1x16x96xf32> to vector<1x16x4xf32>
    %67 = arith.truncf %66 : vector<1x16x4xf32> to vector<1x16x4xbf16>
    "tpu.trace_start"() <{level = 10 : i32, message = "bnd,bmd->bnm"}> : () -> ()
    %cst_16 = arith.constant dense<0.000000e+00> : vector<1x16x16xf32>
    %68 = tpu.matmul %63, %65, %cst_16 {dimension_numbers = #tpu.dot_dimension_numbers<[2], [2], [1], [1], [0, 0, 0, 1, 1, 1], [0], [0]>} : vector<1x16x4xbf16>, vector<1x16x4xbf16>, vector<1x16x16xf32> -> vector<1x16x16xf32>
    "tpu.trace_stop"() : () -> ()
    %cst_17 = arith.constant dense<0xFF800000> : vector<1x16xf32>
    %69 = vector.multi_reduction <maximumf>, %68, %cst_17 [2] : vector<1x16x16xf32> to vector<1x16xf32>
    %70 = vector.shape_cast %69 : vector<1x16xf32> to vector<1x16x1xf32>
    %71 = vector.broadcast %70 : vector<1x16x1xf32> to vector<1x16x16xf32>
    %72 = arith.subf %68, %71 : vector<1x16x16xf32>
    %73 = math.exp %72 : vector<1x16x16xf32>
    %cst_18 = arith.constant dense<0.000000e+00> : vector<1x16xf32>
    %74 = vector.multi_reduction <add>, %73, %cst_18 [2] : vector<1x16x16xf32> to vector<1x16xf32>
    %75 = vector.shape_cast %74 : vector<1x16xf32> to vector<1x16x1xf32>
    %76 = tpu.reciprocal %75 {approx = true} : vector<1x16x1xf32> -> vector<1x16x1xf32>
    %77 = vector.broadcast %76 : vector<1x16x1xf32> to vector<1x16x16xf32>
    %78 = arith.mulf %73, %77 : vector<1x16x16xf32>
    %79 = arith.truncf %78 : vector<1x16x16xf32> to vector<1x16x16xbf16>
    "tpu.trace_start"() <{level = 10 : i32, message = "bnm,bmd->bnd"}> : () -> ()
    %cst_19 = arith.constant dense<0.000000e+00> : vector<1x16x4xf32>
    %80 = tpu.matmul %79, %67, %cst_19 {dimension_numbers = #tpu.dot_dimension_numbers<[2], [1], [1], [2], [0, 0, 0, 1, 1, 2], [0], [0]>} : vector<1x16x16xbf16>, vector<1x16x4xbf16>, vector<1x16x4xf32> -> vector<1x16x4xf32>
    "tpu.trace_stop"() : () -> ()
    %81 = vector.extract_strided_slice %4 {offsets = [0, 0, 16], sizes = [1, 16, 4], strides = [1, 1, 1]} : vector<1x16x96xf32> to vector<1x16x4xf32>
    %82 = arith.truncf %81 : vector<1x16x4xf32> to vector<1x16x4xbf16>
    %83 = vector.extract_strided_slice %4 {offsets = [0, 0, 48], sizes = [1, 16, 4], strides = [1, 1, 1]} : vector<1x16x96xf32> to vector<1x16x4xf32>
    %84 = arith.truncf %83 : vector<1x16x4xf32> to vector<1x16x4xbf16>
    %85 = vector.extract_strided_slice %4 {offsets = [0, 0, 80], sizes = [1, 16, 4], strides = [1, 1, 1]} : vector<1x16x96xf32> to vector<1x16x4xf32>
    %86 = arith.truncf %85 : vector<1x16x4xf32> to vector<1x16x4xbf16>
    "tpu.trace_start"() <{level = 10 : i32, message = "bnd,bmd->bnm"}> : () -> ()
    %cst_20 = arith.constant dense<0.000000e+00> : vector<1x16x16xf32>
    %87 = tpu.matmul %82, %84, %cst_20 {dimension_numbers = #tpu.dot_dimension_numbers<[2], [2], [1], [1], [0, 0, 0, 1, 1, 1], [0], [0]>} : vector<1x16x4xbf16>, vector<1x16x4xbf16>, vector<1x16x16xf32> -> vector<1x16x16xf32>
    "tpu.trace_stop"() : () -> ()
    %cst_21 = arith.constant dense<0xFF800000> : vector<1x16xf32>
    %88 = vector.multi_reduction <maximumf>, %87, %cst_21 [2] : vector<1x16x16xf32> to vector<1x16xf32>
    %89 = vector.shape_cast %88 : vector<1x16xf32> to vector<1x16x1xf32>
    %90 = vector.broadcast %89 : vector<1x16x1xf32> to vector<1x16x16xf32>
    %91 = arith.subf %87, %90 : vector<1x16x16xf32>
    %92 = math.exp %91 : vector<1x16x16xf32>
    %cst_22 = arith.constant dense<0.000000e+00> : vector<1x16xf32>
    %93 = vector.multi_reduction <add>, %92, %cst_22 [2] : vector<1x16x16xf32> to vector<1x16xf32>
    %94 = vector.shape_cast %93 : vector<1x16xf32> to vector<1x16x1xf32>
    %95 = tpu.reciprocal %94 {approx = true} : vector<1x16x1xf32> -> vector<1x16x1xf32>
    %96 = vector.broadcast %95 : vector<1x16x1xf32> to vector<1x16x16xf32>
    %97 = arith.mulf %92, %96 : vector<1x16x16xf32>
    %98 = arith.truncf %97 : vector<1x16x16xf32> to vector<1x16x16xbf16>
    "tpu.trace_start"() <{level = 10 : i32, message = "bnm,bmd->bnd"}> : () -> ()
    %cst_23 = arith.constant dense<0.000000e+00> : vector<1x16x4xf32>
    %99 = tpu.matmul %98, %86, %cst_23 {dimension_numbers = #tpu.dot_dimension_numbers<[2], [1], [1], [2], [0, 0, 0, 1, 1, 2], [0], [0]>} : vector<1x16x16xbf16>, vector<1x16x4xbf16>, vector<1x16x4xf32> -> vector<1x16x4xf32>
    "tpu.trace_stop"() : () -> ()
    %100 = vector.extract_strided_slice %4 {offsets = [0, 0, 20], sizes = [1, 16, 4], strides = [1, 1, 1]} : vector<1x16x96xf32> to vector<1x16x4xf32>
    %101 = arith.truncf %100 : vector<1x16x4xf32> to vector<1x16x4xbf16>
    %102 = vector.extract_strided_slice %4 {offsets = [0, 0, 52], sizes = [1, 16, 4], strides = [1, 1, 1]} : vector<1x16x96xf32> to vector<1x16x4xf32>
    %103 = arith.truncf %102 : vector<1x16x4xf32> to vector<1x16x4xbf16>
    %104 = vector.extract_strided_slice %4 {offsets = [0, 0, 84], sizes = [1, 16, 4], strides = [1, 1, 1]} : vector<1x16x96xf32> to vector<1x16x4xf32>
    %105 = arith.truncf %104 : vector<1x16x4xf32> to vector<1x16x4xbf16>
    "tpu.trace_start"() <{level = 10 : i32, message = "bnd,bmd->bnm"}> : () -> ()
    %cst_24 = arith.constant dense<0.000000e+00> : vector<1x16x16xf32>
    %106 = tpu.matmul %101, %103, %cst_24 {dimension_numbers = #tpu.dot_dimension_numbers<[2], [2], [1], [1], [0, 0, 0, 1, 1, 1], [0], [0]>} : vector<1x16x4xbf16>, vector<1x16x4xbf16>, vector<1x16x16xf32> -> vector<1x16x16xf32>
    "tpu.trace_stop"() : () -> ()
    %cst_25 = arith.constant dense<0xFF800000> : vector<1x16xf32>
    %107 = vector.multi_reduction <maximumf>, %106, %cst_25 [2] : vector<1x16x16xf32> to vector<1x16xf32>
    %108 = vector.shape_cast %107 : vector<1x16xf32> to vector<1x16x1xf32>
    %109 = vector.broadcast %108 : vector<1x16x1xf32> to vector<1x16x16xf32>
    %110 = arith.subf %106, %109 : vector<1x16x16xf32>
    %111 = math.exp %110 : vector<1x16x16xf32>
    %cst_26 = arith.constant dense<0.000000e+00> : vector<1x16xf32>
    %112 = vector.multi_reduction <add>, %111, %cst_26 [2] : vector<1x16x16xf32> to vector<1x16xf32>
    %113 = vector.shape_cast %112 : vector<1x16xf32> to vector<1x16x1xf32>
    %114 = tpu.reciprocal %113 {approx = true} : vector<1x16x1xf32> -> vector<1x16x1xf32>
    %115 = vector.broadcast %114 : vector<1x16x1xf32> to vector<1x16x16xf32>
    %116 = arith.mulf %111, %115 : vector<1x16x16xf32>
    %117 = arith.truncf %116 : vector<1x16x16xf32> to vector<1x16x16xbf16>
    "tpu.trace_start"() <{level = 10 : i32, message = "bnm,bmd->bnd"}> : () -> ()
    %cst_27 = arith.constant dense<0.000000e+00> : vector<1x16x4xf32>
    %118 = tpu.matmul %117, %105, %cst_27 {dimension_numbers = #tpu.dot_dimension_numbers<[2], [1], [1], [2], [0, 0, 0, 1, 1, 2], [0], [0]>} : vector<1x16x16xbf16>, vector<1x16x4xbf16>, vector<1x16x4xf32> -> vector<1x16x4xf32>
    "tpu.trace_stop"() : () -> ()
    %119 = vector.extract_strided_slice %4 {offsets = [0, 0, 24], sizes = [1, 16, 4], strides = [1, 1, 1]} : vector<1x16x96xf32> to vector<1x16x4xf32>
    %120 = arith.truncf %119 : vector<1x16x4xf32> to vector<1x16x4xbf16>
    %121 = vector.extract_strided_slice %4 {offsets = [0, 0, 56], sizes = [1, 16, 4], strides = [1, 1, 1]} : vector<1x16x96xf32> to vector<1x16x4xf32>
    %122 = arith.truncf %121 : vector<1x16x4xf32> to vector<1x16x4xbf16>
    %123 = vector.extract_strided_slice %4 {offsets = [0, 0, 88], sizes = [1, 16, 4], strides = [1, 1, 1]} : vector<1x16x96xf32> to vector<1x16x4xf32>
    %124 = arith.truncf %123 : vector<1x16x4xf32> to vector<1x16x4xbf16>
    "tpu.trace_start"() <{level = 10 : i32, message = "bnd,bmd->bnm"}> : () -> ()
    %cst_28 = arith.constant dense<0.000000e+00> : vector<1x16x16xf32>
    %125 = tpu.matmul %120, %122, %cst_28 {dimension_numbers = #tpu.dot_dimension_numbers<[2], [2], [1], [1], [0, 0, 0, 1, 1, 1], [0], [0]>} : vector<1x16x4xbf16>, vector<1x16x4xbf16>, vector<1x16x16xf32> -> vector<1x16x16xf32>
    "tpu.trace_stop"() : () -> ()
    %cst_29 = arith.constant dense<0xFF800000> : vector<1x16xf32>
    %126 = vector.multi_reduction <maximumf>, %125, %cst_29 [2] : vector<1x16x16xf32> to vector<1x16xf32>
    %127 = vector.shape_cast %126 : vector<1x16xf32> to vector<1x16x1xf32>
    %128 = vector.broadcast %127 : vector<1x16x1xf32> to vector<1x16x16xf32>
    %129 = arith.subf %125, %128 : vector<1x16x16xf32>
    %130 = math.exp %129 : vector<1x16x16xf32>
    %cst_30 = arith.constant dense<0.000000e+00> : vector<1x16xf32>
    %131 = vector.multi_reduction <add>, %130, %cst_30 [2] : vector<1x16x16xf32> to vector<1x16xf32>
    %132 = vector.shape_cast %131 : vector<1x16xf32> to vector<1x16x1xf32>
    %133 = tpu.reciprocal %132 {approx = true} : vector<1x16x1xf32> -> vector<1x16x1xf32>
    %134 = vector.broadcast %133 : vector<1x16x1xf32> to vector<1x16x16xf32>
    %135 = arith.mulf %130, %134 : vector<1x16x16xf32>
    %136 = arith.truncf %135 : vector<1x16x16xf32> to vector<1x16x16xbf16>
    "tpu.trace_start"() <{level = 10 : i32, message = "bnm,bmd->bnd"}> : () -> ()
    %cst_31 = arith.constant dense<0.000000e+00> : vector<1x16x4xf32>
    %137 = tpu.matmul %136, %124, %cst_31 {dimension_numbers = #tpu.dot_dimension_numbers<[2], [1], [1], [2], [0, 0, 0, 1, 1, 2], [0], [0]>} : vector<1x16x16xbf16>, vector<1x16x4xbf16>, vector<1x16x4xf32> -> vector<1x16x4xf32>
    "tpu.trace_stop"() : () -> ()
    %138 = vector.extract_strided_slice %4 {offsets = [0, 0, 28], sizes = [1, 16, 4], strides = [1, 1, 1]} : vector<1x16x96xf32> to vector<1x16x4xf32>
    %139 = arith.truncf %138 : vector<1x16x4xf32> to vector<1x16x4xbf16>
    %140 = vector.extract_strided_slice %4 {offsets = [0, 0, 60], sizes = [1, 16, 4], strides = [1, 1, 1]} : vector<1x16x96xf32> to vector<1x16x4xf32>
    %141 = arith.truncf %140 : vector<1x16x4xf32> to vector<1x16x4xbf16>
    %142 = vector.extract_strided_slice %4 {offsets = [0, 0, 92], sizes = [1, 16, 4], strides = [1, 1, 1]} : vector<1x16x96xf32> to vector<1x16x4xf32>
    %143 = arith.truncf %142 : vector<1x16x4xf32> to vector<1x16x4xbf16>
    "tpu.trace_start"() <{level = 10 : i32, message = "bnd,bmd->bnm"}> : () -> ()
    %cst_32 = arith.constant dense<0.000000e+00> : vector<1x16x16xf32>
    %144 = tpu.matmul %139, %141, %cst_32 {dimension_numbers = #tpu.dot_dimension_numbers<[2], [2], [1], [1], [0, 0, 0, 1, 1, 1], [0], [0]>} : vector<1x16x4xbf16>, vector<1x16x4xbf16>, vector<1x16x16xf32> -> vector<1x16x16xf32>
    "tpu.trace_stop"() : () -> ()
    %cst_33 = arith.constant dense<0xFF800000> : vector<1x16xf32>
    %145 = vector.multi_reduction <maximumf>, %144, %cst_33 [2] : vector<1x16x16xf32> to vector<1x16xf32>
    %146 = vector.shape_cast %145 : vector<1x16xf32> to vector<1x16x1xf32>
    %147 = vector.broadcast %146 : vector<1x16x1xf32> to vector<1x16x16xf32>
    %148 = arith.subf %144, %147 : vector<1x16x16xf32>
    %149 = math.exp %148 : vector<1x16x16xf32>
    %cst_34 = arith.constant dense<0.000000e+00> : vector<1x16xf32>
    %150 = vector.multi_reduction <add>, %149, %cst_34 [2] : vector<1x16x16xf32> to vector<1x16xf32>
    %151 = vector.shape_cast %150 : vector<1x16xf32> to vector<1x16x1xf32>
    %152 = tpu.reciprocal %151 {approx = true} : vector<1x16x1xf32> -> vector<1x16x1xf32>
    %153 = vector.broadcast %152 : vector<1x16x1xf32> to vector<1x16x16xf32>
    %154 = arith.mulf %149, %153 : vector<1x16x16xf32>
    %155 = arith.truncf %154 : vector<1x16x16xf32> to vector<1x16x16xbf16>
    "tpu.trace_start"() <{level = 10 : i32, message = "bnm,bmd->bnd"}> : () -> ()
    %cst_35 = arith.constant dense<0.000000e+00> : vector<1x16x4xf32>
    %156 = tpu.matmul %155, %143, %cst_35 {dimension_numbers = #tpu.dot_dimension_numbers<[2], [1], [1], [2], [0, 0, 0, 1, 1, 2], [0], [0]>} : vector<1x16x16xbf16>, vector<1x16x4xbf16>, vector<1x16x4xf32> -> vector<1x16x4xf32>
    "tpu.trace_stop"() : () -> ()
    %157 = tpu.concatenate %23, %42, %61, %80, %99, %118, %137, %156 in 2 : vector<1x16x4xf32>, vector<1x16x4xf32>, vector<1x16x4xf32>, vector<1x16x4xf32>, vector<1x16x4xf32>, vector<1x16x4xf32>, vector<1x16x4xf32>, vector<1x16x4xf32> -> vector<1x16x32xf32>
    %158 = arith.truncf %157 : vector<1x16x32xf32> to vector<1x16x32xbf16>
    %159 = vector.shape_cast %158 : vector<1x16x32xbf16> to vector<16x32xbf16>
    %c0_36 = arith.constant 0 : index
    %c0_37 = arith.constant 0 : index
    %160 = vector.load %arg3[%c0_36, %c0_37] : memref<32x32xbf16, #tpu.memory_space<vmem>>, vector<32x32xbf16>
    %cst_38 = arith.constant dense<0.000000e+00> : vector<16x32xf32>
    %161 = tpu.matmul %159, %160, %cst_38 {dimension_numbers = #tpu.dot_dimension_numbers<[1], [0], [0], [1], [0, 0, 1, 1], [], []>} : vector<16x32xbf16>, vector<32x32xbf16>, vector<16x32xf32> -> vector<16x32xf32>
    %c0_39 = arith.constant 0 : index
    %c0_40 = arith.constant 0 : index
    %162 = vector.load %arg4[%c0_39, %c0_40] : memref<1x32xf32, #tpu.memory_space<vmem>>, vector<1x32xf32>
    %163 = vector.broadcast %162 : vector<1x32xf32> to vector<16x32xf32>
    %164 = arith.addf %161, %163 : vector<16x32xf32>
    %165 = vector.shape_cast %164 : vector<16x32xf32> to vector<1x16x32xf32>
    %c0_41 = arith.constant 0 : index
    %c0_42 = arith.constant 0 : index
    %c0_43 = arith.constant 0 : index
    %166 = vector.load %arg5[%c0_41, %c0_42, %c0_43] : memref<1x16x32xf32, #tpu.memory_space<vmem>>, vector<1x16x32xf32>
    tpu.vector_store %arg5[%c0_41, %c0_42, %c0_43], %165 {strides = array<i32>} : memref<1x16x32xf32, #tpu.memory_space<vmem>>, vector<1x16x32xf32>,
    return
  }
  func.func @transform_0(%arg0: i32) -> (i32, i32, i32) {
    %c0_i32 = arith.constant 0 : i32
    %c0_i32_0 = arith.constant 0 : i32
    %c0_i32_1 = arith.constant 0 : i32
    return %arg0, %c0_i32, %c0_i32_0 : i32, i32, i32
  }
  func.func @transform_1(%arg0: i32) -> (i32, i32) {
    %c0_i32 = arith.constant 0 : i32
    %c0_i32_0 = arith.constant 0 : i32
    %c0_i32_1 = arith.constant 0 : i32
    return %c0_i32, %c0_i32_0 : i32, i32
  }
  func.func @transform_2(%arg0: i32) -> (i32, i32) {
    %c0_i32 = arith.constant 0 : i32
    %c0_i32_0 = arith.constant 0 : i32
    %c0_i32_1 = arith.constant 0 : i32
    return %c0_i32, %c0_i32_0 : i32, i32
  }
  func.func @transform_3(%arg0: i32) -> (i32, i32) {
    %c0_i32 = arith.constant 0 : i32
    %c0_i32_0 = arith.constant 0 : i32
    %c0_i32_1 = arith.constant 0 : i32
    return %c0_i32, %c0_i32_0 : i32, i32
  }
  func.func @transform_4(%arg0: i32) -> (i32, i32, i32) {
    %c0_i32 = arith.constant 0 : i32
    %c0_i32_0 = arith.constant 0 : i32
    %c0_i32_1 = arith.constant 0 : i32
    return %arg0, %c0_i32, %c0_i32_0 : i32, i32, i32
  }
}

</mosaic_0001>

<llo_original>
// kernel: tpu_custom_call.1
$region0: #{tpu_custom_call.1}
  #allocation0 [shape = 'u32[]', space=smem, size = 0x4, offset = 0x4, fixed_abs, tag = 'smem constant byte address 0x4 - core index']
  #allocation1 [shape = 'u32[144,128]{1,0:T(1,128)}', space=vmem, size = 0x12000, scoped, tag = 'internal scratch']
  %s0 = inlined_call_operand.hbm [shape: bf16[2,16,32], index: 0, kind: input, shape index: {}]
  %s1 = inlined_call_operand.hbm [shape: bf16[32,96], index: 1, kind: input, shape index: {}]
  %s2 = inlined_call_operand.hbm [shape: bf16[32,32], index: 2, kind: input, shape index: {}]
  %s3 = inlined_call_operand.vmem [shape: f32[1,32], index: 3, kind: input, shape index: {}]
  %s4 = inlined_call_operand.hbm [shape: f32[2,16,32], index: 4, kind: output, shape index: {}]
  %s5 = sld [smem:[#allocation0]]
  $region61: #{tpu_custom_call.1} parent=0
    _
  %s7 = ssub.s32 1, %s5
  %s8 = scalar_select 0, %s7, %s5
  $region1: #{tpu_custom_call.1} parent=0
    #allocation2 [shape = 'u8[8192]{0}', space=vmem, size = 0x2000, scoped, tag = 'input window, operand 0']
    #allocation3 [shape = 's32[2]{0}', space=sflag, size = 0x8, scoped, tag = 'scoped memory for tpu_custom_call.1']
    #allocation4 [shape = 's32[2]{0}', space=sflag, size = 0x8, scoped, tag = 'scoped memory for tpu_custom_call.1']
    #allocation5 [shape = 'u8[8192]{0}', space=vmem, size = 0x2000, scoped, tag = 'input window, operand 1, single buffered']
    #allocation6 [shape = 's32[1]{0}', space=sflag, size = 0x4, scoped, tag = 'scoped memory for tpu_custom_call.1']
    #allocation7 [shape = 'u8[8192]{0}', space=vmem, size = 0x2000, scoped, tag = 'input window, operand 2, single buffered']
    #allocation8 [shape = 'u8[16384]{0}', space=vmem, size = 0x4000, scoped, tag = 'output window, operand 0']
    %9 = vsyncpa [#allocation3], 0
    %s10 = scalar_lea.sflag [#allocation3], 1
    %11 = vsyncpa %s10, 0
    %12 = vsyncpa [#allocation6], 0
    %13 = vsyncpa [#allocation4], 0
    %s14 = scalar_lea.sflag [#allocation4], 1
    %15 = vsyncpa %s14, 0
    loop: start=0, step=1, limit=4
    $region2: #{tpu_custom_call.1} parent=1 // loop_pre_header
      _
    $region3: #{tpu_custom_call.1} parent=1 // loop_header
      %s17 = sphi 0, %s21
      %p18 = scmp.ge.s32.totalorder %s17, 4
      %s27 = sphi 0, %s29
      %s30 = sphi 0, %s27
      %s31 = sphi 0, %s30
      %s47 = sphi 0, %s31
      %s51 = sphi 0, %s51
      %s53 = sphi 0, %s51
      %s54 = sphi 0, %s53
      %s68 = sphi 0, %s54
      %s72 = sphi 0, %s72
      %s74 = sphi 0, %s72
      %s75 = sphi 0, %s74
      %s89 = sphi 0, %s75
      %s93 = sphi 0, %s93
      %s95 = sphi 0, %s93
      %s96 = sphi 0, %s95
      %s110 = sphi 0, %s96
      %s116 = sphi 0, %s118
      %s119 = sphi 0, %s116
      %s120 = sphi 0, %s119
      %s136 = sphi 0, %s120
    $region4: #{tpu_custom_call.1} parent=1 // loop_header_branch
      %20 = sbr.rel (%p18) target = $region8
    $region5: #{tpu_custom_call.1} parent=1 // loop_body
      %s22 = ssub.s32 %s17, 1
      %s23 = ssub.s32 %s17, 2
      %s24 = sadd.s32 %s17, 1
      %s25 = ssub.s32 %s17, %s24
      %p26 = scmp.eq.s32.totalorder %s25, 0
      %s28 = sadd.s32 %s27, 1
      %s29 = scalar_select %p26, %s27, %s28
      %p32 = pneg %p26
      %p33 = scmp.eq.s32.totalorder %s17, 1
      %p34 = por %p32, %p33
      %p35 = scmp.ne.s32.totalorder %s27, %s30
      %p36 = scmp.eq.s32.totalorder %s17, 0
      %p37 = por %p35, %p36
      %p38 = scmp.ne.s32.totalorder %s27, %s30
      %p39 = scmp.eq.s32.totalorder %s22, 1
      %p40 = por %p38, %p39
      %p41 = scmp.ne.s32.totalorder %s30, %s31
      %p42 = scmp.eq.s32.totalorder %s22, 0
      %p43 = por %p41, %p42
      %p44 = scmp.ne.s32.totalorder %s30, %s31
      %p45 = scmp.eq.s32.totalorder %s23, 1
      %p46 = por %p44, %p45
      %p48 = scmp.ne.s32.totalorder %s31, %s47
      %p49 = scmp.eq.s32.totalorder %s23, 0
      %p50 = por %p48, %p49
      %s52 = sadd.s32 %s51, 1
      %p55 = scmp.eq.s32.totalorder %s17, 1
      %p56 = scmp.ne.s32.totalorder %s51, %s53
      %p57 = scmp.eq.s32.totalorder %s17, 0
      %p58 = por %p56, %p57
      %p59 = scmp.ne.s32.totalorder %s51, %s53
      %p60 = scmp.eq.s32.totalorder %s22, 1
      %p61 = por %p59, %p60
      %p62 = scmp.ne.s32.totalorder %s53, %s54
      %p63 = scmp.eq.s32.totalorder %s22, 0
      %p64 = por %p62, %p63
      %p65 = scmp.ne.s32.totalorder %s53, %s54
      %p66 = scmp.eq.s32.totalorder %s23, 1
      %p67 = por %p65, %p66
      %p69 = scmp.ne.s32.totalorder %s54, %s68
      %p70 = scmp.eq.s32.totalorder %s23, 0
      %p71 = por %p69, %p70
      %s73 = sadd.s32 %s72, 1
      %p76 = scmp.eq.s32.totalorder %s17, 1
      %p77 = scmp.ne.s32.totalorder %s72, %s74
      %p78 = scmp.eq.s32.totalorder %s17, 0
      %p79 = por %p77, %p78
      %p80 = scmp.ne.s32.totalorder %s72, %s74
      %p81 = scmp.eq.s32.totalorder %s22, 1
      %p82 = por %p80, %p81
      %p83 = scmp.ne.s32.totalorder %s74, %s75
      %p84 = scmp.eq.s32.totalorder %s22, 0
      %p85 = por %p83, %p84
      %p86 = scmp.ne.s32.totalorder %s74, %s75
      %p87 = scmp.eq.s32.totalorder %s23, 1
      %p88 = por %p86, %p87
      %p90 = scmp.ne.s32.totalorder %s75, %s89
      %p91 = scmp.eq.s32.totalorder %s23, 0
      %p92 = por %p90, %p91
      %s94 = sadd.s32 %s93, 1
      %p97 = scmp.eq.s32.totalorder %s17, 1
      %p98 = scmp.ne.s32.totalorder %s93, %s95
      %p99 = scmp.eq.s32.totalorder %s17, 0
      %p100 = por %p98, %p99
      %p101 = scmp.ne.s32.totalorder %s93, %s95
      %p102 = scmp.eq.s32.totalorder %s22, 1
      %p103 = por %p101, %p102
      %p104 = scmp.ne.s32.totalorder %s95, %s96
      %p105 = scmp.eq.s32.totalorder %s22, 0
      %p106 = por %p104, %p105
      %p107 = scmp.ne.s32.totalorder %s95, %s96
      %p108 = scmp.eq.s32.totalorder %s23, 1
      %p109 = por %p107, %p108
      %p111 = scmp.ne.s32.totalorder %s96, %s110
      %p112 = scmp.eq.s32.totalorder %s23, 0
      %p113 = por %p111, %p112
      %s114 = ssub.s32 %s17, %s24
      %p115 = scmp.eq.s32.totalorder %s114, 0
      %s117 = sadd.s32 %s116, 1
      %s118 = scalar_select %p115, %s116, %s117
      %p121 = pneg %p115
      %p122 = scmp.eq.s32.totalorder %s17, 1
      %p123 = por %p121, %p122
      %p124 = scmp.ne.s32.totalorder %s116, %s119
      %p125 = scmp.eq.s32.totalorder %s17, 0
      %p126 = por %p124, %p125
      %p127 = scmp.ne.s32.totalorder %s116, %s119
      %p128 = scmp.eq.s32.totalorder %s22, 1
      %p129 = por %p127, %p128
      %p130 = scmp.ne.s32.totalorder %s119, %s120
      %p131 = scmp.eq.s32.totalorder %s22, 0
      %p132 = por %p130, %p131
      %p133 = scmp.ne.s32.totalorder %s119, %s120
      %p134 = scmp.eq.s32.totalorder %s23, 1
      %p135 = por %p133, %p134
      %p137 = scmp.ne.s32.totalorder %s120, %s136
      %p138 = scmp.eq.s32.totalorder %s23, 0
      %p139 = por %p137, %p138
      %p140 = scmp.le.s32.totalorder 1, %s17
      %p141 = scmp.lt.s32.totalorder %s17, 3
      %p142 = pnand %p140, %p141
      %p143 = pneg %p142
      // Predicated region
      $region9: #{tpu_custom_call.1} parent=5 // pred_check
        _
      $region10: #{tpu_custom_call.1} parent=5 // pred_check_branch
        %145 = sbr.rel (%p142) target = $region12
      $region11: #{tpu_custom_call.1} parent=5 // pred_region
        %s146 = ssub.s32 %s17, 1
        // Predicated region
        $region13: #{tpu_custom_call.1} parent=11 // pred_check
          %p147 = pneg %p64
        $region14: #{tpu_custom_call.1} parent=11 // pred_check_branch
          %149 = sbr.rel (%p147) target = $region16
        $region15: #{tpu_custom_call.1} parent=11 // pred_region
          %s151 = ssub.s32 256, 256
          %152 = vsyncadd [#allocation6], %s151
          %s153 = sshll.u32 [#allocation5], 4
          %s154 = int_to_ptr.vmem [resolvable:$true] %s153
          %159 = dma.hbm_to_vmem [thread:$0]  %s1, 256, %s154, [#allocation6], 64, 64, 4
        $region16: #{tpu_custom_call.1} parent=11 // pred_fallthru
          _
        // Predicated region
        $region17: #{tpu_custom_call.1} parent=11 // pred_check
          %p160 = pneg %p85
        $region18: #{tpu_custom_call.1} parent=11 // pred_check_branch
          %162 = sbr.rel (%p160) target = $region20
        $region19: #{tpu_custom_call.1} parent=11 // pred_region
          %s164 = ssub.s32 256, 256
          %165 = vsyncadd [#allocation6], %s164
          %s166 = sshll.u32 [#allocation7], 4
          %s167 = int_to_ptr.vmem [resolvable:$true] %s166
          %172 = dma.hbm_to_vmem [thread:$0]  %s2, 256, %s167, [#allocation6], 64, 64, 4
        $region20: #{tpu_custom_call.1} parent=11 // pred_fallthru
          _
        // Predicated region
        $region21: #{tpu_custom_call.1} parent=11 // pred_check
          %p173 = pneg %p106
        $region22: #{tpu_custom_call.1} parent=11 // pred_check_branch
          %175 = sbr.rel (%p173) target = $region24
        $region23: #{tpu_custom_call.1} parent=11 // pred_region
          _
        $region24: #{tpu_custom_call.1} parent=11 // pred_fallthru
          _
      $region12: #{tpu_custom_call.1} parent=5 // pred_fallthru
        _
      %p176 = scmp.lt.s32.totalorder %s17, 2
      // Predicated region
      $region25: #{tpu_custom_call.1} parent=5 // pred_check
        %p177 = pneg %p176
      $region26: #{tpu_custom_call.1} parent=5 // pred_check_branch
        %179 = sbr.rel (%p177) target = $region28
      $region27: #{tpu_custom_call.1} parent=5 // pred_region
        // Predicated region
        $region29: #{tpu_custom_call.1} parent=27 // pred_check
          %p180 = pneg %p37
        $region30: #{tpu_custom_call.1} parent=27 // pred_check_branch
          %182 = sbr.rel (%p180) target = $region32
        $region31: #{tpu_custom_call.1} parent=27 // pred_region
          %s183 = sand.u32 %s27, 1
          %s184 = scalar_lea.sflag [#allocation3], %s183
          %s185 = sand.u32 %s27, 1
          %s186 = smul.addr %s185, 8
          %s187 = scalar_lea.vmem [#allocation2], %s186
          %s189 = ssub.s32 128, 128
          %190 = vsyncadd %s184, %s189
          %s191 = smul.addr %s17, 2
          %s192 = smul.addr %s191, 64
          %s193 = scalar_lea.hbm %s0, %s192
          %s194 = sshll.u32 %s187, 4
          %s195 = int_to_ptr.vmem [resolvable:$true] %s194
          %200 = dma.hbm_to_vmem [thread:$0]  %s193, 128, %s195, %s184, 64, 64, 4
        $region32: #{tpu_custom_call.1} parent=27 // pred_fallthru
          _
      $region28: #{tpu_custom_call.1} parent=5 // pred_fallthru
        _
      %p201 = scmp.le.s32.totalorder 1, %s17
      %p202 = scmp.lt.s32.totalorder %s17, 3
      %p203 = pnand %p201, %p202
      %p204 = pneg %p203
      // Predicated region
      $region33: #{tpu_custom_call.1} parent=5 // pred_check
        _
      $region34: #{tpu_custom_call.1} parent=5 // pred_check_branch
        %206 = sbr.rel (%p203) target = $region36
      $region35: #{tpu_custom_call.1} parent=5 // pred_region
        %s207 = ssub.s32 %s17, 1
        %s208 = sand.u32 %s30, 1
        %s209 = scalar_lea.sflag [#allocation3], %s208
        %s210 = sand.u32 %s30, 1
        %s211 = smul.addr %s210, 8
        %s212 = scalar_lea.vmem [#allocation2], %s211
        // Predicated region
        $region37: #{tpu_custom_call.1} parent=35 // pred_check
          %p213 = pneg %p43
        $region38: #{tpu_custom_call.1} parent=35 // pred_check_branch
          %215 = sbr.rel (%p213) target = $region40
        $region39: #{tpu_custom_call.1} parent=35 // pred_region
          %216 = dma.done %s209, 128
        $region40: #{tpu_custom_call.1} parent=35 // pred_fallthru
          _
        // Predicated region
        $region41: #{tpu_custom_call.1} parent=35 // pred_check
          %p217 = pneg %p64
        $region42: #{tpu_custom_call.1} parent=35 // pred_check_branch
          %219 = sbr.rel (%p217) target = $region44
        $region43: #{tpu_custom_call.1} parent=35 // pred_region
          %220 = dma.done [#allocation6], 256
        $region44: #{tpu_custom_call.1} parent=35 // pred_fallthru
          _
        // Predicated region
        $region45: #{tpu_custom_call.1} parent=35 // pred_check
          %p221 = pneg %p85
        $region46: #{tpu_custom_call.1} parent=35 // pred_check_branch
          %223 = sbr.rel (%p221) target = $region48
        $region47: #{tpu_custom_call.1} parent=35 // pred_region
          %224 = dma.done [#allocation6], 256
        $region48: #{tpu_custom_call.1} parent=35 // pred_fallthru
          _
        %s225 = sand.u32 %s30, 1
        %s226 = scalar_lea.sflag [#allocation3], %s225
        %s227 = sand.u32 %s30, 1
        %s228 = smul.addr %s227, 8
        %s229 = scalar_lea.vmem [#allocation2], %s228
        %p230 = pneg %p43
        %p231 = pneg %p40
        %p232 = pneg %p64
        %p233 = pneg %p61
        %p234 = pneg %p85
        %p235 = pneg %p82
        %p236 = pneg %p106
        %p237 = pneg %p103
        %p238 = pneg %p132
        %p239 = pneg %p129
        %s240 = sand.u32 %s119, 1
        %s241 = scalar_lea.sflag [#allocation4], %s240
        %s242 = sand.u32 %s119, 1
        %s243 = smul.addr %s242, 16
        %s244 = scalar_lea.vmem [#allocation8], %s243
        %v246 = vld [vmem:[%s212] sm:$0xf]
        %v247 = vld [vmem:[%s212 + $0x4] sm:$0xf]
        %v248 = vld [vmem:[#allocation5] sm:$0xf]
        %v249 = vld [vmem:[#allocation5 + $0x4] sm:$0xf]
        %v250 = vld [vmem:[#allocation5 + $0x8] sm:$0xf]
        %v251 = vld [vmem:[#allocation5 + $0xc] sm:$0xf]
        %v254 = vunpack.c.l.b16 %v246
        %v255 = vunpack.c.l.b16 %v247
        %v256 = vpack.c.b16 %v255, %v254
        %v261 = vunpack.c.l.b16 %v248
        %v262 = vunpack.c.l.b16 %v249
        %v263 = vunpack.c.l.b16 %v250
        %v264 = vunpack.c.l.b16 %v251
        %v265 = vpack.c.b16 %v262, %v261
        %v266 = vpack.c.b16 %v264, %v263
        %vm269 = vcmask 261120
        %v271 = vsel %vm269, %v256, 0
        %273 = vmatprep.subr.bf16.mxu0 0
        %274 = vmatpush1.bf16.msra.mxu0 %v265
        %275 = vmatprep.subr.bf16.mxu0 0
        %276 = vmatpush1.bf16.msra.mxu0 %v266
        %277 = vmatprep.subr.bf16.mxu0 0
        %278 = vmatpush1.bf16.msra.mxu0 0
        %279 = vmatprep.subr.bf16.mxu0 0
        %280 = vmatpush1.bf16.msra.mxu0 0
        %281 = vmatprep.subr.bf16.mxu0 0
        %282 = vmatpush1.bf16.msra.mxu0 0
        %283 = vmatprep.subr.bf16.mxu0 0
        %284 = vmatpush1.bf16.msra.mxu0 0
        %285 = vmatprep.subr.bf16.mxu0 0
        %286 = vmatpush1.bf16.msra.mxu0 0
        %287 = vmatprep.subr.bf16.mxu0 0
        %288 = vmatpush1.bf16.msra.mxu0 0
        %289 = vmatprep.subr.bf16.mxu0 0
        %290 = vmatpush1.bf16.msra.mxu0 0
        %291 = vmatprep.subr.bf16.mxu0 0
        %292 = vmatpush1.bf16.msra.mxu0 0
        %293 = vmatprep.subr.bf16.mxu0 0
        %294 = vmatpush1.bf16.msra.mxu0 0
        %295 = vmatprep.subr.bf16.mxu0 0
        %296 = vmatpush1.bf16.msra.mxu0 0
        %297 = vmatprep.subr.bf16.mxu0 0
        %298 = vmatpush1.bf16.msra.mxu0 0
        %299 = vmatprep.subr.bf16.mxu0 0
        %300 = vmatpush1.bf16.msra.mxu0 0
        %301 = vmatprep.subr.bf16.mxu0 0
        %302 = vmatpush1.bf16.msra.mxu0 0
        %303 = vmatprep.subr.bf16.mxu0 0
        %304 = vmatpush1.bf16.msra.mxu0 0
        %305 = vmatprep.mubr.bf16.mxu0 0
        %306 = vmatmul.mubr.bf16.gmra.mrb[0].mxu0 %v271
        %v307 = vpop.f32.mrb[0].mxu0
        %v308 = vadd.f32 0.0, %v307
        %v309 = vpop.f32.mrb[0].mxu0
        %v310 = vpop.f32.mrb[0].mxu0
        %v311 = vadd.f32 0.0, %v310
        %v312 = vpop.f32.mrb[0].mxu0
        %313 = vdwg.mxu0
        %v314 = vpack.c.bf16 %v311, %v308
        %316 = vrot.lane.b32.xlu0 %v314, 96
        %v317 = vpop.permute.xlu0 %316
        %vm318 = vcmask 31744
        %v320 = vsel %vm318, %v314, 0
        %v323 = vsel %vm318, %v317, 0
        %325 = vmatprep.subr.bf16.mxu0 0
        %326 = vmatpush1.bf16.xpose.msra.mxu0 %v323
        %327 = vmatprep.subr.bf16.mxu0 0
        %328 = vmatpush1.bf16.xpose.msra.mxu0 0
        %329 = vmatprep.subr.bf16.mxu0 0
        %330 = vmatpush1.bf16.xpose.msra.mxu0 0
        %331 = vmatprep.subr.bf16.mxu0 0
        %332 = vmatpush1.bf16.xpose.msra.mxu0 0
        %333 = vmatprep.subr.bf16.mxu0 0
        %334 = vmatpush1.bf16.xpose.msra.mxu0 0
        %335 = vmatprep.subr.bf16.mxu0 0
        %336 = vmatpush1.bf16.xpose.msra.mxu0 0
        %337 = vmatprep.subr.bf16.mxu0 0
        %338 = vmatpush1.bf16.xpose.msra.mxu0 0
        %339 = vmatprep.subr.bf16.mxu0 0
        %340 = vmatpush1.bf16.xpose.msra.mxu0 0
        %341 = vmatprep.subr.bf16.mxu0 0
        %342 = vmatpush1.bf16.xpose.msra.mxu0 0
        %343 = vmatprep.subr.bf16.mxu0 0
        %344 = vmatpush1.bf16.xpose.msra.mxu0 0
        %345 = vmatprep.subr.bf16.mxu0 0
        %346 = vmatpush1.bf16.xpose.msra.mxu0 0
        %347 = vmatprep.subr.bf16.mxu0 0
        %348 = vmatpush1.bf16.xpose.msra.mxu0 0
        %349 = vmatprep.subr.bf16.mxu0 0
        %350 = vmatpush1.bf16.xpose.msra.mxu0 0
        %351 = vmatprep.subr.bf16.mxu0 0
        %352 = vmatpush1.bf16.xpose.msra.mxu0 0
        %353 = vmatprep.subr.bf16.mxu0 0
        %354 = vmatpush1.bf16.xpose.msra.mxu0 0
        %355 = vmatprep.subr.bf16.mxu0 0
        %356 = vmatpush1.bf16.xpose.msra.mxu0 0
        %357 = vmatprep.mubr.bf16.mxu0 0
        %358 = vmatmul.mubr.bf16.gmra.mrb[0].mxu0 %v320
        %v359 = vpop.f32.mrb[0].mxu0
        %v360 = vadd.f32 0.0, %v359
        %v361 = vpop.f32.mrb[0].mxu0
        %v362 = vpop.f32.mrb[0].mxu0
        %v363 = vadd.f32 0.0, %v362
        %v364 = vpop.f32.mrb[0].mxu0
        %365 = vdwg.mxu0
        %vm366 = vcmask 130048
        %v367 = vsel %vm366, %v360, -inf
        %368 = vmax.xlane.f32.xlu0 %v367
        %v369 = vpop.xlane.xlu0 %368
        %v370 = vsel %vm366, %v363, -inf
        %371 = vmax.xlane.f32.xlu0 %v370
        %v372 = vpop.xlane.xlu0 %371
        %v373 = vsub.f32 %v360, %v369
        %v374 = vsub.f32 %v363, %v372
        %v375 = vmul.f32 %v373, 1.442695
        %v376 = vpow.pop %v375
        %v377 = vmul.f32 %v374, 1.442695
        %v378 = vpow.pop %v377
        %v379 = vsel %vm366, %v376, 0.0
        %380 = vadd.xlane.f32.xlu0 %v379
        %v381 = vpop.xlane.xlu0 %380
        %v382 = vsel %vm366, %v378, 0.0
        %383 = vadd.xlane.f32.xlu0 %v382
        %v384 = vpop.xlane.xlu0 %383
        %v385 = vrcp.pop %v381
        %v386 = vrcp.pop %v384
        %v387 = vmul.f32 %v376, %v385
        %v388 = vmul.f32 %v378, %v386
        %v389 = vpack.c.bf16 %v388, %v387
        %390 = vrot.lane.b32.xlu0 %v314, 64
        %v391 = vpop.permute.xlu0 %390
        %v394 = vsel %vm366, %v389, 0
        %396 = vmatprep.subr.bf16.mxu0 0
        %397 = vmatpush1.bf16.msra.mxu0 %v391
        %398 = vmatprep.subr.bf16.mxu0 0
        %399 = vmatpush1.bf16.msra.mxu0 0
        %400 = vmatprep.subr.bf16.mxu0 0
        %401 = vmatpush1.bf16.msra.mxu0 0
        %402 = vmatprep.subr.bf16.mxu0 0
        %403 = vmatpush1.bf16.msra.mxu0 0
        %404 = vmatprep.subr.bf16.mxu0 0
        %405 = vmatpush1.bf16.msra.mxu0 0
        %406 = vmatprep.subr.bf16.mxu0 0
        %407 = vmatpush1.bf16.msra.mxu0 0
        %408 = vmatprep.subr.bf16.mxu0 0
        %409 = vmatpush1.bf16.msra.mxu0 0
        %410 = vmatprep.subr.bf16.mxu0 0
        %411 = vmatpush1.bf16.msra.mxu0 0
        %412 = vmatprep.subr.bf16.mxu0 0
        %413 = vmatpush1.bf16.msra.mxu0 0
        %414 = vmatprep.subr.bf16.mxu0 0
        %415 = vmatpush1.bf16.msra.mxu0 0
        %416 = vmatprep.subr.bf16.mxu0 0
        %417 = vmatpush1.bf16.msra.mxu0 0
        %418 = vmatprep.subr.bf16.mxu0 0
        %419 = vmatpush1.bf16.msra.mxu0 0
        %420 = vmatprep.subr.bf16.mxu0 0
        %421 = vmatpush1.bf16.msra.mxu0 0
        %422 = vmatprep.subr.bf16.mxu0 0
        %423 = vmatpush1.bf16.msra.mxu0 0
        %424 = vmatprep.subr.bf16.mxu0 0
        %425 = vmatpush1.bf16.msra.mxu0 0
        %426 = vmatprep.subr.bf16.mxu0 0
        %427 = vmatpush1.bf16.msra.mxu0 0
        %428 = vmatprep.mubr.bf16.mxu0 0
        %429 = vmatmul.mubr.bf16.gmra.mrb[0].mxu0 %v394
        %v430 = vpop.f32.mrb[0].mxu0
        %v431 = vadd.f32 0.0, %v430
        %v432 = vpop.f32.mrb[0].mxu0
        %v433 = vpop.f32.mrb[0].mxu0
        %v434 = vadd.f32 0.0, %v433
        %v435 = vpop.f32.mrb[0].mxu0
        %436 = vdwg.mxu0
        %437 = vrot.lane.b32.xlu0 %v314, 124
        %v438 = vpop.permute.xlu0 %437
        %439 = vrot.lane.b32.xlu0 %v314, 92
        %v440 = vpop.permute.xlu0 %439
        %v442 = vsel %vm318, %v438, 0
        %v445 = vsel %vm318, %v440, 0
        %447 = vmatprep.subr.bf16.mxu0 0
        %448 = vmatpush1.bf16.xpose.msra.mxu0 %v445
        %449 = vmatprep.subr.bf16.mxu0 0
        %450 = vmatpush1.bf16.xpose.msra.mxu0 0
        %451 = vmatprep.subr.bf16.mxu0 0
        %452 = vmatpush1.bf16.xpose.msra.mxu0 0
        %453 = vmatprep.subr.bf16.mxu0 0
        %454 = vmatpush1.bf16.xpose.msra.mxu0 0
        %455 = vmatprep.subr.bf16.mxu0 0
        %456 = vmatpush1.bf16.xpose.msra.mxu0 0
        %457 = vmatprep.subr.bf16.mxu0 0
        %458 = vmatpush1.bf16.xpose.msra.mxu0 0
        %459 = vmatprep.subr.bf16.mxu0 0
        %460 = vmatpush1.bf16.xpose.msra.mxu0 0
        %461 = vmatprep.subr.bf16.mxu0 0
        %462 = vmatpush1.bf16.xpose.msra.mxu0 0
        %463 = vmatprep.subr.bf16.mxu0 0
        %464 = vmatpush1.bf16.xpose.msra.mxu0 0
        %465 = vmatprep.subr.bf16.mxu0 0
        %466 = vmatpush1.bf16.xpose.msra.mxu0 0
        %467 = vmatprep.subr.bf16.mxu0 0
        %468 = vmatpush1.bf16.xpose.msra.mxu0 0
        %469 = vmatprep.subr.bf16.mxu0 0
        %470 = vmatpush1.bf16.xpose.msra.mxu0 0
        %471 = vmatprep.subr.bf16.mxu0 0
        %472 = vmatpush1.bf16.xpose.msra.mxu0 0
        %473 = vmatprep.subr.bf16.mxu0 0
        %474 = vmatpush1.bf16.xpose.msra.mxu0 0
        %475 = vmatprep.subr.bf16.mxu0 0
        %476 = vmatpush1.bf16.xpose.msra.mxu0 0
        %477 = vmatprep.subr.bf16.mxu0 0
        %478 = vmatpush1.bf16.xpose.msra.mxu0 0
        %479 = vmatprep.mubr.bf16.mxu0 0
        %480 = vmatmul.mubr.bf16.gmra.mrb[0].mxu0 %v442
        %v481 = vpop.f32.mrb[0].mxu0
        %v482 = vadd.f32 0.0, %v481
        %v483 = vpop.f32.mrb[0].mxu0
        %v484 = vpop.f32.mrb[0].mxu0
        %v485 = vadd.f32 0.0, %v484
        %v486 = vpop.f32.mrb[0].mxu0
        %487 = vdwg.mxu0
        %v488 = vsel %vm366, %v482, -inf
        %489 = vmax.xlane.f32.xlu0 %v488
        %v490 = vpop.xlane.xlu0 %489
        %v491 = vsel %vm366, %v485, -inf
        %492 = vmax.xlane.f32.xlu0 %v491
        %v493 = vpop.xlane.xlu0 %492
        %v494 = vsub.f32 %v482, %v490
        %v495 = vsub.f32 %v485, %v493
        %v496 = vmul.f32 %v494, 1.442695
        %v497 = vpow.pop %v496
        %v498 = vmul.f32 %v495, 1.442695
        %v499 = vpow.pop %v498
        %v500 = vsel %vm366, %v497, 0.0
        %501 = vadd.xlane.f32.xlu0 %v500
        %v502 = vpop.xlane.xlu0 %501
        %v503 = vsel %vm366, %v499, 0.0
        %504 = vadd.xlane.f32.xlu0 %v503
        %v505 = vpop.xlane.xlu0 %504
        %v506 = vrcp.pop %v502
        %v507 = vrcp.pop %v505
        %v508 = vmul.f32 %v497, %v506
        %v509 = vmul.f32 %v499, %v507
        %v510 = vpack.c.bf16 %v509, %v508
        %511 = vrot.lane.b32.xlu0 %v314, 60
        %v512 = vpop.permute.xlu0 %511
        %v515 = vsel %vm366, %v510, 0
        %517 = vmatprep.subr.bf16.mxu0 0
        %518 = vmatpush1.bf16.msra.mxu0 %v512
        %519 = vmatprep.subr.bf16.mxu0 0
        %520 = vmatpush1.bf16.msra.mxu0 0
        %521 = vmatprep.subr.bf16.mxu0 0
        %522 = vmatpush1.bf16.msra.mxu0 0
        %523 = vmatprep.subr.bf16.mxu0 0
        %524 = vmatpush1.bf16.msra.mxu0 0
        %525 = vmatprep.subr.bf16.mxu0 0
        %526 = vmatpush1.bf16.msra.mxu0 0
        %527 = vmatprep.subr.bf16.mxu0 0
        %528 = vmatpush1.bf16.msra.mxu0 0
        %529 = vmatprep.subr.bf16.mxu0 0
        %530 = vmatpush1.bf16.msra.mxu0 0
        %531 = vmatprep.subr.bf16.mxu0 0
        %532 = vmatpush1.bf16.msra.mxu0 0
        %533 = vmatprep.subr.bf16.mxu0 0
        %534 = vmatpush1.bf16.msra.mxu0 0
        %535 = vmatprep.subr.bf16.mxu0 0
        %536 = vmatpush1.bf16.msra.mxu0 0
        %537 = vmatprep.subr.bf16.mxu0 0
        %538 = vmatpush1.bf16.msra.mxu0 0
        %539 = vmatprep.subr.bf16.mxu0 0
        %540 = vmatpush1.bf16.msra.mxu0 0
        %541 = vmatprep.subr.bf16.mxu0 0
        %542 = vmatpush1.bf16.msra.mxu0 0
        %543 = vmatprep.subr.bf16.mxu0 0
        %544 = vmatpush1.bf16.msra.mxu0 0
        %545 = vmatprep.subr.bf16.mxu0 0
        %546 = vmatpush1.bf16.msra.mxu0 0
        %547 = vmatprep.subr.bf16.mxu0 0
        %548 = vmatpush1.bf16.msra.mxu0 0
        %549 = vmatprep.mubr.bf16.mxu0 0
        %550 = vmatmul.mubr.bf16.gmra.mrb[0].mxu0 %v515
        %v551 = vpop.f32.mrb[0].mxu0
        %v552 = vadd.f32 0.0, %v551
        %v553 = vpop.f32.mrb[0].mxu0
        %v554 = vpop.f32.mrb[0].mxu0
        %v555 = vadd.f32 0.0, %v554
        %v556 = vpop.f32.mrb[0].mxu0
        %557 = vdwg.mxu0
        %558 = vrot.lane.b32.xlu0 %v314, 120
        %v559 = vpop.permute.xlu0 %558
        %560 = vrot.lane.b32.xlu0 %v314, 88
        %v561 = vpop.permute.xlu0 %560
        %v563 = vsel %vm318, %v559, 0
        %v566 = vsel %vm318, %v561, 0
        %568 = vmatprep.subr.bf16.mxu0 0
        %569 = vmatpush1.bf16.xpose.msra.mxu0 %v566
        %570 = vmatprep.subr.bf16.mxu0 0
        %571 = vmatpush1.bf16.xpose.msra.mxu0 0
        %572 = vmatprep.subr.bf16.mxu0 0
        %573 = vmatpush1.bf16.xpose.msra.mxu0 0
        %574 = vmatprep.subr.bf16.mxu0 0
        %575 = vmatpush1.bf16.xpose.msra.mxu0 0
        %576 = vmatprep.subr.bf16.mxu0 0
        %577 = vmatpush1.bf16.xpose.msra.mxu0 0
        %578 = vmatprep.subr.bf16.mxu0 0
        %579 = vmatpush1.bf16.xpose.msra.mxu0 0
        %580 = vmatprep.subr.bf16.mxu0 0
        %581 = vmatpush1.bf16.xpose.msra.mxu0 0
        %582 = vmatprep.subr.bf16.mxu0 0
        %583 = vmatpush1.bf16.xpose.msra.mxu0 0
        %584 = vmatprep.subr.bf16.mxu0 0
        %585 = vmatpush1.bf16.xpose.msra.mxu0 0
        %586 = vmatprep.subr.bf16.mxu0 0
        %587 = vmatpush1.bf16.xpose.msra.mxu0 0
        %588 = vmatprep.subr.bf16.mxu0 0
        %589 = vmatpush1.bf16.xpose.msra.mxu0 0
        %590 = vmatprep.subr.bf16.mxu0 0
        %591 = vmatpush1.bf16.xpose.msra.mxu0 0
        %592 = vmatprep.subr.bf16.mxu0 0
        %593 = vmatpush1.bf16.xpose.msra.mxu0 0
        %594 = vmatprep.subr.bf16.mxu0 0
        %595 = vmatpush1.bf16.xpose.msra.mxu0 0
        %596 = vmatprep.subr.bf16.mxu0 0
        %597 = vmatpush1.bf16.xpose.msra.mxu0 0
        %598 = vmatprep.subr.bf16.mxu0 0
        %599 = vmatpush1.bf16.xpose.msra.mxu0 0
        %600 = vmatprep.mubr.bf16.mxu0 0
        %601 = vmatmul.mubr.bf16.gmra.mrb[0].mxu0 %v563
        %v602 = vpop.f32.mrb[0].mxu0
        %v603 = vadd.f32 0.0, %v602
        %v604 = vpop.f32.mrb[0].mxu0
        %v605 = vpop.f32.mrb[0].mxu0
        %v606 = vadd.f32 0.0, %v605
        %v607 = vpop.f32.mrb[0].mxu0
        %608 = vdwg.mxu0
        %v609 = vsel %vm366, %v603, -inf
        %610 = vmax.xlane.f32.xlu0 %v609
        %v611 = vpop.xlane.xlu0 %610
        %v612 = vsel %vm366, %v606, -inf
        %613 = vmax.xlane.f32.xlu0 %v612
        %v614 = vpop.xlane.xlu0 %613
        %v615 = vsub.f32 %v603, %v611
        %v616 = vsub.f32 %v606, %v614
        %v617 = vmul.f32 %v615, 1.442695
        %v618 = vpow.pop %v617
        %v619 = vmul.f32 %v616, 1.442695
        %v620 = vpow.pop %v619
        %v621 = vsel %vm366, %v618, 0.0
        %622 = vadd.xlane.f32.xlu0 %v621
        %v623 = vpop.xlane.xlu0 %622
        %v624 = vsel %vm366, %v620, 0.0
        %625 = vadd.xlane.f32.xlu0 %v624
        %v626 = vpop.xlane.xlu0 %625
        %v627 = vrcp.pop %v623
        %v628 = vrcp.pop %v626
        %v629 = vmul.f32 %v618, %v627
        %v630 = vmul.f32 %v620, %v628
        %v631 = vpack.c.bf16 %v630, %v629
        %632 = vrot.lane.b32.xlu0 %v314, 56
        %v633 = vpop.permute.xlu0 %632
        %v636 = vsel %vm366, %v631, 0
        %638 = vmatprep.subr.bf16.mxu0 0
        %639 = vmatpush1.bf16.msra.mxu0 %v633
        %640 = vmatprep.subr.bf16.mxu0 0
        %641 = vmatpush1.bf16.msra.mxu0 0
        %642 = vmatprep.subr.bf16.mxu0 0
        %643 = vmatpush1.bf16.msra.mxu0 0
        %644 = vmatprep.subr.bf16.mxu0 0
        %645 = vmatpush1.bf16.msra.mxu0 0
        %646 = vmatprep.subr.bf16.mxu0 0
        %647 = vmatpush1.bf16.msra.mxu0 0
        %648 = vmatprep.subr.bf16.mxu0 0
        %649 = vmatpush1.bf16.msra.mxu0 0
        %650 = vmatprep.subr.bf16.mxu0 0
        %651 = vmatpush1.bf16.msra.mxu0 0
        %652 = vmatprep.subr.bf16.mxu0 0
        %653 = vmatpush1.bf16.msra.mxu0 0
        %654 = vmatprep.subr.bf16.mxu0 0
        %655 = vmatpush1.bf16.msra.mxu0 0
        %656 = vmatprep.subr.bf16.mxu0 0
        %657 = vmatpush1.bf16.msra.mxu0 0
        %658 = vmatprep.subr.bf16.mxu0 0
        %659 = vmatpush1.bf16.msra.mxu0 0
        %660 = vmatprep.subr.bf16.mxu0 0
        %661 = vmatpush1.bf16.msra.mxu0 0
        %662 = vmatprep.subr.bf16.mxu0 0
        %663 = vmatpush1.bf16.msra.mxu0 0
        %664 = vmatprep.subr.bf16.mxu0 0
        %665 = vmatpush1.bf16.msra.mxu0 0
        %666 = vmatprep.subr.bf16.mxu0 0
        %667 = vmatpush1.bf16.msra.mxu0 0
        %668 = vmatprep.subr.bf16.mxu0 0
        %669 = vmatpush1.bf16.msra.mxu0 0
        %670 = vmatprep.mubr.bf16.mxu0 0
        %671 = vmatmul.mubr.bf16.gmra.mrb[0].mxu0 %v636
        %v672 = vpop.f32.mrb[0].mxu0
        %v673 = vadd.f32 0.0, %v672
        %v674 = vpop.f32.mrb[0].mxu0
        %v675 = vpop.f32.mrb[0].mxu0
        %v676 = vadd.f32 0.0, %v675
        %v677 = vpop.f32.mrb[0].mxu0
        %678 = vdwg.mxu0
        %679 = vrot.lane.b32.xlu0 %v314, 116
        %v680 = vpop.permute.xlu0 %679
        %681 = vrot.lane.b32.xlu0 %v314, 84
        %v682 = vpop.permute.xlu0 %681
        %v684 = vsel %vm318, %v680, 0
        %v687 = vsel %vm318, %v682, 0
        %689 = vmatprep.subr.bf16.mxu0 0
        %690 = vmatpush1.bf16.xpose.msra.mxu0 %v687
        %691 = vmatprep.subr.bf16.mxu0 0
        %692 = vmatpush1.bf16.xpose.msra.mxu0 0
        %693 = vmatprep.subr.bf16.mxu0 0
        %694 = vmatpush1.bf16.xpose.msra.mxu0 0
        %695 = vmatprep.subr.bf16.mxu0 0
        %696 = vmatpush1.bf16.xpose.msra.mxu0 0
        %697 = vmatprep.subr.bf16.mxu0 0
        %698 = vmatpush1.bf16.xpose.msra.mxu0 0
        %699 = vmatprep.subr.bf16.mxu0 0
        %700 = vmatpush1.bf16.xpose.msra.mxu0 0
        %701 = vmatprep.subr.bf16.mxu0 0
        %702 = vmatpush1.bf16.xpose.msra.mxu0 0
        %703 = vmatprep.subr.bf16.mxu0 0
        %704 = vmatpush1.bf16.xpose.msra.mxu0 0
        %705 = vmatprep.subr.bf16.mxu0 0
        %706 = vmatpush1.bf16.xpose.msra.mxu0 0
        %707 = vmatprep.subr.bf16.mxu0 0
        %708 = vmatpush1.bf16.xpose.msra.mxu0 0
        %709 = vmatprep.subr.bf16.mxu0 0
        %710 = vmatpush1.bf16.xpose.msra.mxu0 0
        %711 = vmatprep.subr.bf16.mxu0 0
        %712 = vmatpush1.bf16.xpose.msra.mxu0 0
        %713 = vmatprep.subr.bf16.mxu0 0
        %714 = vmatpush1.bf16.xpose.msra.mxu0 0
        %715 = vmatprep.subr.bf16.mxu0 0
        %716 = vmatpush1.bf16.xpose.msra.mxu0 0
        %717 = vmatprep.subr.bf16.mxu0 0
        %718 = vmatpush1.bf16.xpose.msra.mxu0 0
        %719 = vmatprep.subr.bf16.mxu0 0
        %720 = vmatpush1.bf16.xpose.msra.mxu0 0
        %721 = vmatprep.mubr.bf16.mxu0 0
        %722 = vmatmul.mubr.bf16.gmra.mrb[0].mxu0 %v684
        %v723 = vpop.f32.mrb[0].mxu0
        %v724 = vadd.f32 0.0, %v723
        %v725 = vpop.f32.mrb[0].mxu0
        %v726 = vpop.f32.mrb[0].mxu0
        %v727 = vadd.f32 0.0, %v726
        %v728 = vpop.f32.mrb[0].mxu0
        %729 = vdwg.mxu0
        %v730 = vsel %vm366, %v724, -inf
        %731 = vmax.xlane.f32.xlu0 %v730
        %v732 = vpop.xlane.xlu0 %731
        %v733 = vsel %vm366, %v727, -inf
        %734 = vmax.xlane.f32.xlu0 %v733
        %v735 = vpop.xlane.xlu0 %734
        %v736 = vsub.f32 %v724, %v732
        %v737 = vsub.f32 %v727, %v735
        %v738 = vmul.f32 %v736, 1.442695
        %v739 = vpow.pop %v738
        %v740 = vmul.f32 %v737, 1.442695
        %v741 = vpow.pop %v740
        %v742 = vsel %vm366, %v739, 0.0
        %743 = vadd.xlane.f32.xlu0 %v742
        %v744 = vpop.xlane.xlu0 %743
        %v745 = vsel %vm366, %v741, 0.0
        %746 = vadd.xlane.f32.xlu0 %v745
        %v747 = vpop.xlane.xlu0 %746
        %v748 = vrcp.pop %v744
        %v749 = vrcp.pop %v747
        %v750 = vmul.f32 %v739, %v748
        %v751 = vmul.f32 %v741, %v749
        %v752 = vpack.c.bf16 %v751, %v750
        %753 = vrot.lane.b32.xlu0 %v314, 52
        %v754 = vpop.permute.xlu0 %753
        %v757 = vsel %vm366, %v752, 0
        %759 = vmatprep.subr.bf16.mxu0 0
        %760 = vmatpush1.bf16.msra.mxu0 %v754
        %761 = vmatprep.subr.bf16.mxu0 0
        %762 = vmatpush1.bf16.msra.mxu0 0
        %763 = vmatprep.subr.bf16.mxu0 0
        %764 = vmatpush1.bf16.msra.mxu0 0
        %765 = vmatprep.subr.bf16.mxu0 0
        %766 = vmatpush1.bf16.msra.mxu0 0
        %767 = vmatprep.subr.bf16.mxu0 0
        %768 = vmatpush1.bf16.msra.mxu0 0
        %769 = vmatprep.subr.bf16.mxu0 0
        %770 = vmatpush1.bf16.msra.mxu0 0
        %771 = vmatprep.subr.bf16.mxu0 0
        %772 = vmatpush1.bf16.msra.mxu0 0
        %773 = vmatprep.subr.bf16.mxu0 0
        %774 = vmatpush1.bf16.msra.mxu0 0
        %775 = vmatprep.subr.bf16.mxu0 0
        %776 = vmatpush1.bf16.msra.mxu0 0
        %777 = vmatprep.subr.bf16.mxu0 0
        %778 = vmatpush1.bf16.msra.mxu0 0
        %779 = vmatprep.subr.bf16.mxu0 0
        %780 = vmatpush1.bf16.msra.mxu0 0
        %781 = vmatprep.subr.bf16.mxu0 0
        %782 = vmatpush1.bf16.msra.mxu0 0
        %783 = vmatprep.subr.bf16.mxu0 0
        %784 = vmatpush1.bf16.msra.mxu0 0
        %785 = vmatprep.subr.bf16.mxu0 0
        %786 = vmatpush1.bf16.msra.mxu0 0
        %787 = vmatprep.subr.bf16.mxu0 0
        %788 = vmatpush1.bf16.msra.mxu0 0
        %789 = vmatprep.subr.bf16.mxu0 0
        %790 = vmatpush1.bf16.msra.mxu0 0
        %791 = vmatprep.mubr.bf16.mxu0 0
        %792 = vmatmul.mubr.bf16.gmra.mrb[0].mxu0 %v757
        %v793 = vpop.f32.mrb[0].mxu0
        %v794 = vadd.f32 0.0, %v793
        %v795 = vpop.f32.mrb[0].mxu0
        %v796 = vpop.f32.mrb[0].mxu0
        %v797 = vadd.f32 0.0, %v796
        %v798 = vpop.f32.mrb[0].mxu0
        %799 = vdwg.mxu0
        %800 = vrot.lane.b32.xlu0 %v314, 112
        %v801 = vpop.permute.xlu0 %800
        %802 = vrot.lane.b32.xlu0 %v314, 80
        %v803 = vpop.permute.xlu0 %802
        %v805 = vsel %vm318, %v801, 0
        %v808 = vsel %vm318, %v803, 0
        %810 = vmatprep.subr.bf16.mxu0 0
        %811 = vmatpush1.bf16.xpose.msra.mxu0 %v808
        %812 = vmatprep.subr.bf16.mxu0 0
        %813 = vmatpush1.bf16.xpose.msra.mxu0 0
        %814 = vmatprep.subr.bf16.mxu0 0
        %815 = vmatpush1.bf16.xpose.msra.mxu0 0
        %816 = vmatprep.subr.bf16.mxu0 0
        %817 = vmatpush1.bf16.xpose.msra.mxu0 0
        %818 = vmatprep.subr.bf16.mxu0 0
        %819 = vmatpush1.bf16.xpose.msra.mxu0 0
        %820 = vmatprep.subr.bf16.mxu0 0
        %821 = vmatpush1.bf16.xpose.msra.mxu0 0
        %822 = vmatprep.subr.bf16.mxu0 0
        %823 = vmatpush1.bf16.xpose.msra.mxu0 0
        %824 = vmatprep.subr.bf16.mxu0 0
        %825 = vmatpush1.bf16.xpose.msra.mxu0 0
        %826 = vmatprep.subr.bf16.mxu0 0
        %827 = vmatpush1.bf16.xpose.msra.mxu0 0
        %828 = vmatprep.subr.bf16.mxu0 0
        %829 = vmatpush1.bf16.xpose.msra.mxu0 0
        %830 = vmatprep.subr.bf16.mxu0 0
        %831 = vmatpush1.bf16.xpose.msra.mxu0 0
        %832 = vmatprep.subr.bf16.mxu0 0
        %833 = vmatpush1.bf16.xpose.msra.mxu0 0
        %834 = vmatprep.subr.bf16.mxu0 0
        %835 = vmatpush1.bf16.xpose.msra.mxu0 0
        %836 = vmatprep.subr.bf16.mxu0 0
        %837 = vmatpush1.bf16.xpose.msra.mxu0 0
        %838 = vmatprep.subr.bf16.mxu0 0
        %839 = vmatpush1.bf16.xpose.msra.mxu0 0
        %840 = vmatprep.subr.bf16.mxu0 0
        %841 = vmatpush1.bf16.xpose.msra.mxu0 0
        %842 = vmatprep.mubr.bf16.mxu0 0
        %843 = vmatmul.mubr.bf16.gmra.mrb[0].mxu0 %v805
        %v844 = vpop.f32.mrb[0].mxu0
        %v845 = vadd.f32 0.0, %v844
        %v846 = vpop.f32.mrb[0].mxu0
        %v847 = vpop.f32.mrb[0].mxu0
        %v848 = vadd.f32 0.0, %v847
        %v849 = vpop.f32.mrb[0].mxu0
        %850 = vdwg.mxu0
        %v851 = vsel %vm366, %v845, -inf
        %852 = vmax.xlane.f32.xlu0 %v851
        %v853 = vpop.xlane.xlu0 %852
        %v854 = vsel %vm366, %v848, -inf
        %855 = vmax.xlane.f32.xlu0 %v854
        %v856 = vpop.xlane.xlu0 %855
        %v857 = vsub.f32 %v845, %v853
        %v858 = vsub.f32 %v848, %v856
        %v859 = vmul.f32 %v857, 1.442695
        %v860 = vpow.pop %v859
        %v861 = vmul.f32 %v858, 1.442695
        %v862 = vpow.pop %v861
        %v863 = vsel %vm366, %v860, 0.0
        %864 = vadd.xlane.f32.xlu0 %v863
        %v865 = vpop.xlane.xlu0 %864
        %v866 = vsel %vm366, %v862, 0.0
        %867 = vadd.xlane.f32.xlu0 %v866
        %v868 = vpop.xlane.xlu0 %867
        %v869 = vrcp.pop %v865
        %v870 = vrcp.pop %v868
        %v871 = vmul.f32 %v860, %v869
        %v872 = vmul.f32 %v862, %v870
        %v873 = vpack.c.bf16 %v872, %v871
        %874 = vrot.lane.b32.xlu0 %v314, 48
        %v875 = vpop.permute.xlu0 %874
        %v878 = vsel %vm366, %v873, 0
        %880 = vmatprep.subr.bf16.mxu0 0
        %881 = vmatpush1.bf16.msra.mxu0 %v875
        %882 = vmatprep.subr.bf16.mxu0 0
        %883 = vmatpush1.bf16.msra.mxu0 0
        %884 = vmatprep.subr.bf16.mxu0 0
        %885 = vmatpush1.bf16.msra.mxu0 0
        %886 = vmatprep.subr.bf16.mxu0 0
        %887 = vmatpush1.bf16.msra.mxu0 0
        %888 = vmatprep.subr.bf16.mxu0 0
        %889 = vmatpush1.bf16.msra.mxu0 0
        %890 = vmatprep.subr.bf16.mxu0 0
        %891 = vmatpush1.bf16.msra.mxu0 0
        %892 = vmatprep.subr.bf16.mxu0 0
        %893 = vmatpush1.bf16.msra.mxu0 0
        %894 = vmatprep.subr.bf16.mxu0 0
        %895 = vmatpush1.bf16.msra.mxu0 0
        %896 = vmatprep.subr.bf16.mxu0 0
        %897 = vmatpush1.bf16.msra.mxu0 0
        %898 = vmatprep.subr.bf16.mxu0 0
        %899 = vmatpush1.bf16.msra.mxu0 0
        %900 = vmatprep.subr.bf16.mxu0 0
        %901 = vmatpush1.bf16.msra.mxu0 0
        %902 = vmatprep.subr.bf16.mxu0 0
        %903 = vmatpush1.bf16.msra.mxu0 0
        %904 = vmatprep.subr.bf16.mxu0 0
        %905 = vmatpush1.bf16.msra.mxu0 0
        %906 = vmatprep.subr.bf16.mxu0 0
        %907 = vmatpush1.bf16.msra.mxu0 0
        %908 = vmatprep.subr.bf16.mxu0 0
        %909 = vmatpush1.bf16.msra.mxu0 0
        %910 = vmatprep.subr.bf16.mxu0 0
        %911 = vmatpush1.bf16.msra.mxu0 0
        %912 = vmatprep.mubr.bf16.mxu0 0
        %913 = vmatmul.mubr.bf16.gmra.mrb[0].mxu0 %v878
        %v914 = vpop.f32.mrb[0].mxu0
        %v915 = vadd.f32 0.0, %v914
        %v916 = vpop.f32.mrb[0].mxu0
        %v917 = vpop.f32.mrb[0].mxu0
        %v918 = vadd.f32 0.0, %v917
        %v919 = vpop.f32.mrb[0].mxu0
        %920 = vdwg.mxu0
        %921 = vrot.lane.b32.xlu0 %v314, 108
        %v922 = vpop.permute.xlu0 %921
        %923 = vrot.lane.b32.xlu0 %v314, 76
        %v924 = vpop.permute.xlu0 %923
        %v926 = vsel %vm318, %v922, 0
        %v929 = vsel %vm318, %v924, 0
        %931 = vmatprep.subr.bf16.mxu0 0
        %932 = vmatpush1.bf16.xpose.msra.mxu0 %v929
        %933 = vmatprep.subr.bf16.mxu0 0
        %934 = vmatpush1.bf16.xpose.msra.mxu0 0
        %935 = vmatprep.subr.bf16.mxu0 0
        %936 = vmatpush1.bf16.xpose.msra.mxu0 0
        %937 = vmatprep.subr.bf16.mxu0 0
        %938 = vmatpush1.bf16.xpose.msra.mxu0 0
        %939 = vmatprep.subr.bf16.mxu0 0
        %940 = vmatpush1.bf16.xpose.msra.mxu0 0
        %941 = vmatprep.subr.bf16.mxu0 0
        %942 = vmatpush1.bf16.xpose.msra.mxu0 0
        %943 = vmatprep.subr.bf16.mxu0 0
        %944 = vmatpush1.bf16.xpose.msra.mxu0 0
        %945 = vmatprep.subr.bf16.mxu0 0
        %946 = vmatpush1.bf16.xpose.msra.mxu0 0
        %947 = vmatprep.subr.bf16.mxu0 0
        %948 = vmatpush1.bf16.xpose.msra.mxu0 0
        %949 = vmatprep.subr.bf16.mxu0 0
        %950 = vmatpush1.bf16.xpose.msra.mxu0 0
        %951 = vmatprep.subr.bf16.mxu0 0
        %952 = vmatpush1.bf16.xpose.msra.mxu0 0
        %953 = vmatprep.subr.bf16.mxu0 0
        %954 = vmatpush1.bf16.xpose.msra.mxu0 0
        %955 = vmatprep.subr.bf16.mxu0 0
        %956 = vmatpush1.bf16.xpose.msra.mxu0 0
        %957 = vmatprep.subr.bf16.mxu0 0
        %958 = vmatpush1.bf16.xpose.msra.mxu0 0
        %959 = vmatprep.subr.bf16.mxu0 0
        %960 = vmatpush1.bf16.xpose.msra.mxu0 0
        %961 = vmatprep.subr.bf16.mxu0 0
        %962 = vmatpush1.bf16.xpose.msra.mxu0 0
        %963 = vmatprep.mubr.bf16.mxu0 0
        %964 = vmatmul.mubr.bf16.gmra.mrb[0].mxu0 %v926
        %v965 = vpop.f32.mrb[0].mxu0
        %v966 = vadd.f32 0.0, %v965
        %v967 = vpop.f32.mrb[0].mxu0
        %v968 = vpop.f32.mrb[0].mxu0
        %v969 = vadd.f32 0.0, %v968
        %v970 = vpop.f32.mrb[0].mxu0
        %971 = vdwg.mxu0
        %v972 = vsel %vm366, %v966, -inf
        %973 = vmax.xlane.f32.xlu0 %v972
        %v974 = vpop.xlane.xlu0 %973
        %v975 = vsel %vm366, %v969, -inf
        %976 = vmax.xlane.f32.xlu0 %v975
        %v977 = vpop.xlane.xlu0 %976
        %v978 = vsub.f32 %v966, %v974
        %v979 = vsub.f32 %v969, %v977
        %v980 = vmul.f32 %v978, 1.442695
        %v981 = vpow.pop %v980
        %v982 = vmul.f32 %v979, 1.442695
        %v983 = vpow.pop %v982
        %v984 = vsel %vm366, %v981, 0.0
        %985 = vadd.xlane.f32.xlu0 %v984
        %v986 = vpop.xlane.xlu0 %985
        %v987 = vsel %vm366, %v983, 0.0
        %988 = vadd.xlane.f32.xlu0 %v987
        %v989 = vpop.xlane.xlu0 %988
        %v990 = vrcp.pop %v986
        %v991 = vrcp.pop %v989
        %v992 = vmul.f32 %v981, %v990
        %v993 = vmul.f32 %v983, %v991
        %v994 = vpack.c.bf16 %v993, %v992
        %995 = vrot.lane.b32.xlu0 %v314, 44
        %v996 = vpop.permute.xlu0 %995
        %v999 = vsel %vm366, %v994, 0
        %1001 = vmatprep.subr.bf16.mxu0 0
        %1002 = vmatpush1.bf16.msra.mxu0 %v996
        %1003 = vmatprep.subr.bf16.mxu0 0
        %1004 = vmatpush1.bf16.msra.mxu0 0
        %1005 = vmatprep.subr.bf16.mxu0 0
        %1006 = vmatpush1.bf16.msra.mxu0 0
        %1007 = vmatprep.subr.bf16.mxu0 0
        %1008 = vmatpush1.bf16.msra.mxu0 0
        %1009 = vmatprep.subr.bf16.mxu0 0
        %1010 = vmatpush1.bf16.msra.mxu0 0
        %1011 = vmatprep.subr.bf16.mxu0 0
        %1012 = vmatpush1.bf16.msra.mxu0 0
        %1013 = vmatprep.subr.bf16.mxu0 0
        %1014 = vmatpush1.bf16.msra.mxu0 0
        %1015 = vmatprep.subr.bf16.mxu0 0
        %1016 = vmatpush1.bf16.msra.mxu0 0
        %1017 = vmatprep.subr.bf16.mxu0 0
        %1018 = vmatpush1.bf16.msra.mxu0 0
        %1019 = vmatprep.subr.bf16.mxu0 0
        %1020 = vmatpush1.bf16.msra.mxu0 0
        %1021 = vmatprep.subr.bf16.mxu0 0
        %1022 = vmatpush1.bf16.msra.mxu0 0
        %1023 = vmatprep.subr.bf16.mxu0 0
        %1024 = vmatpush1.bf16.msra.mxu0 0
        %1025 = vmatprep.subr.bf16.mxu0 0
        %1026 = vmatpush1.bf16.msra.mxu0 0
        %1027 = vmatprep.subr.bf16.mxu0 0
        %1028 = vmatpush1.bf16.msra.mxu0 0
        %1029 = vmatprep.subr.bf16.mxu0 0
        %1030 = vmatpush1.bf16.msra.mxu0 0
        %1031 = vmatprep.subr.bf16.mxu0 0
        %1032 = vmatpush1.bf16.msra.mxu0 0
        %1033 = vmatprep.mubr.bf16.mxu0 0
        %1034 = vmatmul.mubr.bf16.gmra.mrb[0].mxu0 %v999
        %v1035 = vpop.f32.mrb[0].mxu0
        %v1036 = vadd.f32 0.0, %v1035
        %v1037 = vpop.f32.mrb[0].mxu0
        %v1038 = vpop.f32.mrb[0].mxu0
        %v1039 = vadd.f32 0.0, %v1038
        %v1040 = vpop.f32.mrb[0].mxu0
        %1041 = vdwg.mxu0
        %1042 = vrot.lane.b32.xlu0 %v314, 104
        %v1043 = vpop.permute.xlu0 %1042
        %1044 = vrot.lane.b32.xlu0 %v314, 72
        %v1045 = vpop.permute.xlu0 %1044
        %v1047 = vsel %vm318, %v1043, 0
        %v1050 = vsel %vm318, %v1045, 0
        %1052 = vmatprep.subr.bf16.mxu0 0
        %1053 = vmatpush1.bf16.xpose.msra.mxu0 %v1050
        %1054 = vmatprep.subr.bf16.mxu0 0
        %1055 = vmatpush1.bf16.xpose.msra.mxu0 0
        %1056 = vmatprep.subr.bf16.mxu0 0
        %1057 = vmatpush1.bf16.xpose.msra.mxu0 0
        %1058 = vmatprep.subr.bf16.mxu0 0
        %1059 = vmatpush1.bf16.xpose.msra.mxu0 0
        %1060 = vmatprep.subr.bf16.mxu0 0
        %1061 = vmatpush1.bf16.xpose.msra.mxu0 0
        %1062 = vmatprep.subr.bf16.mxu0 0
        %1063 = vmatpush1.bf16.xpose.msra.mxu0 0
        %1064 = vmatprep.subr.bf16.mxu0 0
        %1065 = vmatpush1.bf16.xpose.msra.mxu0 0
        %1066 = vmatprep.subr.bf16.mxu0 0
        %1067 = vmatpush1.bf16.xpose.msra.mxu0 0
        %1068 = vmatprep.subr.bf16.mxu0 0
        %1069 = vmatpush1.bf16.xpose.msra.mxu0 0
        %1070 = vmatprep.subr.bf16.mxu0 0
        %1071 = vmatpush1.bf16.xpose.msra.mxu0 0
        %1072 = vmatprep.subr.bf16.mxu0 0
        %1073 = vmatpush1.bf16.xpose.msra.mxu0 0
        %1074 = vmatprep.subr.bf16.mxu0 0
        %1075 = vmatpush1.bf16.xpose.msra.mxu0 0
        %1076 = vmatprep.subr.bf16.mxu0 0
        %1077 = vmatpush1.bf16.xpose.msra.mxu0 0
        %1078 = vmatprep.subr.bf16.mxu0 0
        %1079 = vmatpush1.bf16.xpose.msra.mxu0 0
        %1080 = vmatprep.subr.bf16.mxu0 0
        %1081 = vmatpush1.bf16.xpose.msra.mxu0 0
        %1082 = vmatprep.subr.bf16.mxu0 0
        %1083 = vmatpush1.bf16.xpose.msra.mxu0 0
        %1084 = vmatprep.mubr.bf16.mxu0 0
        %1085 = vmatmul.mubr.bf16.gmra.mrb[0].mxu0 %v1047
        %v1086 = vpop.f32.mrb[0].mxu0
        %v1087 = vadd.f32 0.0, %v1086
        %v1088 = vpop.f32.mrb[0].mxu0
        %v1089 = vpop.f32.mrb[0].mxu0
        %v1090 = vadd.f32 0.0, %v1089
        %v1091 = vpop.f32.mrb[0].mxu0
        %1092 = vdwg.mxu0
        %v1093 = vsel %vm366, %v1087, -inf
        %1094 = vmax.xlane.f32.xlu0 %v1093
        %v1095 = vpop.xlane.xlu0 %1094
        %v1096 = vsel %vm366, %v1090, -inf
        %1097 = vmax.xlane.f32.xlu0 %v1096
        %v1098 = vpop.xlane.xlu0 %1097
        %v1099 = vsub.f32 %v1087, %v1095
        %v1100 = vsub.f32 %v1090, %v1098
        %v1101 = vmul.f32 %v1099, 1.442695
        %v1102 = vpow.pop %v1101
        %v1103 = vmul.f32 %v1100, 1.442695
        %v1104 = vpow.pop %v1103
        %v1105 = vsel %vm366, %v1102, 0.0
        %1106 = vadd.xlane.f32.xlu0 %v1105
        %v1107 = vpop.xlane.xlu0 %1106
        %v1108 = vsel %vm366, %v1104, 0.0
        %1109 = vadd.xlane.f32.xlu0 %v1108
        %v1110 = vpop.xlane.xlu0 %1109
        %v1111 = vrcp.pop %v1107
        %v1112 = vrcp.pop %v1110
        %v1113 = vmul.f32 %v1102, %v1111
        %v1114 = vmul.f32 %v1104, %v1112
        %v1115 = vpack.c.bf16 %v1114, %v1113
        %1116 = vrot.lane.b32.xlu0 %v314, 40
        %v1117 = vpop.permute.xlu0 %1116
        %v1120 = vsel %vm366, %v1115, 0
        %1122 = vmatprep.subr.bf16.mxu0 0
        %1123 = vmatpush1.bf16.msra.mxu0 %v1117
        %1124 = vmatprep.subr.bf16.mxu0 0
        %1125 = vmatpush1.bf16.msra.mxu0 0
        %1126 = vmatprep.subr.bf16.mxu0 0
        %1127 = vmatpush1.bf16.msra.mxu0 0
        %1128 = vmatprep.subr.bf16.mxu0 0
        %1129 = vmatpush1.bf16.msra.mxu0 0
        %1130 = vmatprep.subr.bf16.mxu0 0
        %1131 = vmatpush1.bf16.msra.mxu0 0
        %1132 = vmatprep.subr.bf16.mxu0 0
        %1133 = vmatpush1.bf16.msra.mxu0 0
        %1134 = vmatprep.subr.bf16.mxu0 0
        %1135 = vmatpush1.bf16.msra.mxu0 0
        %1136 = vmatprep.subr.bf16.mxu0 0
        %1137 = vmatpush1.bf16.msra.mxu0 0
        %1138 = vmatprep.subr.bf16.mxu0 0
        %1139 = vmatpush1.bf16.msra.mxu0 0
        %1140 = vmatprep.subr.bf16.mxu0 0
        %1141 = vmatpush1.bf16.msra.mxu0 0
        %1142 = vmatprep.subr.bf16.mxu0 0
        %1143 = vmatpush1.bf16.msra.mxu0 0
        %1144 = vmatprep.subr.bf16.mxu0 0
        %1145 = vmatpush1.bf16.msra.mxu0 0
        %1146 = vmatprep.subr.bf16.mxu0 0
        %1147 = vmatpush1.bf16.msra.mxu0 0
        %1148 = vmatprep.subr.bf16.mxu0 0
        %1149 = vmatpush1.bf16.msra.mxu0 0
        %1150 = vmatprep.subr.bf16.mxu0 0
        %1151 = vmatpush1.bf16.msra.mxu0 0
        %1152 = vmatprep.subr.bf16.mxu0 0
        %1153 = vmatpush1.bf16.msra.mxu0 0
        %1154 = vmatprep.mubr.bf16.mxu0 0
        %1155 = vmatmul.mubr.bf16.gmra.mrb[0].mxu0 %v1120
        %v1156 = vpop.f32.mrb[0].mxu0
        %v1157 = vadd.f32 0.0, %v1156
        %v1158 = vpop.f32.mrb[0].mxu0
        %v1159 = vpop.f32.mrb[0].mxu0
        %v1160 = vadd.f32 0.0, %v1159
        %v1161 = vpop.f32.mrb[0].mxu0
        %1162 = vdwg.mxu0
        %1163 = vrot.lane.b32.xlu0 %v314, 100
        %v1164 = vpop.permute.xlu0 %1163
        %1165 = vrot.lane.b32.xlu0 %v314, 68
        %v1166 = vpop.permute.xlu0 %1165
        %v1168 = vsel %vm318, %v1164, 0
        %v1171 = vsel %vm318, %v1166, 0
        %1173 = vmatprep.subr.bf16.mxu0 0
        %1174 = vmatpush1.bf16.xpose.msra.mxu0 %v1171
        %1175 = vmatprep.subr.bf16.mxu0 0
        %1176 = vmatpush1.bf16.xpose.msra.mxu0 0
        %1177 = vmatprep.subr.bf16.mxu0 0
        %1178 = vmatpush1.bf16.xpose.msra.mxu0 0
        %1179 = vmatprep.subr.bf16.mxu0 0
        %1180 = vmatpush1.bf16.xpose.msra.mxu0 0
        %1181 = vmatprep.subr.bf16.mxu0 0
        %1182 = vmatpush1.bf16.xpose.msra.mxu0 0
        %1183 = vmatprep.subr.bf16.mxu0 0
        %1184 = vmatpush1.bf16.xpose.msra.mxu0 0
        %1185 = vmatprep.subr.bf16.mxu0 0
        %1186 = vmatpush1.bf16.xpose.msra.mxu0 0
        %1187 = vmatprep.subr.bf16.mxu0 0
        %1188 = vmatpush1.bf16.xpose.msra.mxu0 0
        %1189 = vmatprep.subr.bf16.mxu0 0
        %1190 = vmatpush1.bf16.xpose.msra.mxu0 0
        %1191 = vmatprep.subr.bf16.mxu0 0
        %1192 = vmatpush1.bf16.xpose.msra.mxu0 0
        %1193 = vmatprep.subr.bf16.mxu0 0
        %1194 = vmatpush1.bf16.xpose.msra.mxu0 0
        %1195 = vmatprep.subr.bf16.mxu0 0
        %1196 = vmatpush1.bf16.xpose.msra.mxu0 0
        %1197 = vmatprep.subr.bf16.mxu0 0
        %1198 = vmatpush1.bf16.xpose.msra.mxu0 0
        %1199 = vmatprep.subr.bf16.mxu0 0
        %1200 = vmatpush1.bf16.xpose.msra.mxu0 0
        %1201 = vmatprep.subr.bf16.mxu0 0
        %1202 = vmatpush1.bf16.xpose.msra.mxu0 0
        %1203 = vmatprep.subr.bf16.mxu0 0
        %1204 = vmatpush1.bf16.xpose.msra.mxu0 0
        %1205 = vmatprep.mubr.bf16.mxu0 0
        %1206 = vmatmul.mubr.bf16.gmra.mrb[0].mxu0 %v1168
        %v1207 = vpop.f32.mrb[0].mxu0
        %v1208 = vadd.f32 0.0, %v1207
        %v1209 = vpop.f32.mrb[0].mxu0
        %v1210 = vpop.f32.mrb[0].mxu0
        %v1211 = vadd.f32 0.0, %v1210
        %v1212 = vpop.f32.mrb[0].mxu0
        %1213 = vdwg.mxu0
        %v1214 = vsel %vm366, %v1208, -inf
        %1215 = vmax.xlane.f32.xlu0 %v1214
        %v1216 = vpop.xlane.xlu0 %1215
        %v1217 = vsel %vm366, %v1211, -inf
        %1218 = vmax.xlane.f32.xlu0 %v1217
        %v1219 = vpop.xlane.xlu0 %1218
        %v1220 = vsub.f32 %v1208, %v1216
        %v1221 = vsub.f32 %v1211, %v1219
        %v1222 = vmul.f32 %v1220, 1.442695
        %v1223 = vpow.pop %v1222
        %v1224 = vmul.f32 %v1221, 1.442695
        %v1225 = vpow.pop %v1224
        %v1226 = vsel %vm366, %v1223, 0.0
        %1227 = vadd.xlane.f32.xlu0 %v1226
        %v1228 = vpop.xlane.xlu0 %1227
        %v1229 = vsel %vm366, %v1225, 0.0
        %1230 = vadd.xlane.f32.xlu0 %v1229
        %v1231 = vpop.xlane.xlu0 %1230
        %v1232 = vrcp.pop %v1228
        %v1233 = vrcp.pop %v1231
        %v1234 = vmul.f32 %v1223, %v1232
        %v1235 = vmul.f32 %v1225, %v1233
        %v1236 = vpack.c.bf16 %v1235, %v1234
        %1237 = vrot.lane.b32.xlu0 %v314, 36
        %v1238 = vpop.permute.xlu0 %1237
        %v1241 = vsel %vm366, %v1236, 0
        %1243 = vmatprep.subr.bf16.mxu0 0
        %1244 = vmatpush1.bf16.msra.mxu0 %v1238
        %1245 = vmatprep.subr.bf16.mxu0 0
        %1246 = vmatpush1.bf16.msra.mxu0 0
        %1247 = vmatprep.subr.bf16.mxu0 0
        %1248 = vmatpush1.bf16.msra.mxu0 0
        %1249 = vmatprep.subr.bf16.mxu0 0
        %1250 = vmatpush1.bf16.msra.mxu0 0
        %1251 = vmatprep.subr.bf16.mxu0 0
        %1252 = vmatpush1.bf16.msra.mxu0 0
        %1253 = vmatprep.subr.bf16.mxu0 0
        %1254 = vmatpush1.bf16.msra.mxu0 0
        %1255 = vmatprep.subr.bf16.mxu0 0
        %1256 = vmatpush1.bf16.msra.mxu0 0
        %1257 = vmatprep.subr.bf16.mxu0 0
        %1258 = vmatpush1.bf16.msra.mxu0 0
        %1259 = vmatprep.subr.bf16.mxu0 0
        %1260 = vmatpush1.bf16.msra.mxu0 0
        %1261 = vmatprep.subr.bf16.mxu0 0
        %1262 = vmatpush1.bf16.msra.mxu0 0
        %1263 = vmatprep.subr.bf16.mxu0 0
        %1264 = vmatpush1.bf16.msra.mxu0 0
        %1265 = vmatprep.subr.bf16.mxu0 0
        %1266 = vmatpush1.bf16.msra.mxu0 0
        %1267 = vmatprep.subr.bf16.mxu0 0
        %1268 = vmatpush1.bf16.msra.mxu0 0
        %1269 = vmatprep.subr.bf16.mxu0 0
        %1270 = vmatpush1.bf16.msra.mxu0 0
        %1271 = vmatprep.subr.bf16.mxu0 0
        %1272 = vmatpush1.bf16.msra.mxu0 0
        %1273 = vmatprep.subr.bf16.mxu0 0
        %1274 = vmatpush1.bf16.msra.mxu0 0
        %1275 = vmatprep.mubr.bf16.mxu0 0
        %1276 = vmatmul.mubr.bf16.gmra.mrb[0].mxu0 %v1241
        %v1277 = vpop.f32.mrb[0].mxu0
        %v1278 = vadd.f32 0.0, %v1277
        %v1279 = vpop.f32.mrb[0].mxu0
        %v1280 = vpop.f32.mrb[0].mxu0
        %v1281 = vadd.f32 0.0, %v1280
        %v1282 = vpop.f32.mrb[0].mxu0
        %1283 = vdwg.mxu0
        %1286 = vrot.lane.b32.xlu0 %v552, 4
        %v1287 = vpop.permute.xlu0 %1286
        %1288 = vrot.lane.b32.xlu0 %v555, 4
        %v1289 = vpop.permute.xlu0 %1288
        %1294 = vrot.lane.b32.xlu0 %v673, 8
        %v1295 = vpop.permute.xlu0 %1294
        %1296 = vrot.lane.b32.xlu0 %v676, 8
        %v1297 = vpop.permute.xlu0 %1296
        %1302 = vrot.lane.b32.xlu0 %v794, 12
        %v1303 = vpop.permute.xlu0 %1302
        %1304 = vrot.lane.b32.xlu0 %v797, 12
        %v1305 = vpop.permute.xlu0 %1304
        %1310 = vrot.lane.b32.xlu0 %v915, 16
        %v1311 = vpop.permute.xlu0 %1310
        %1312 = vrot.lane.b32.xlu0 %v918, 16
        %v1313 = vpop.permute.xlu0 %1312
        %1318 = vrot.lane.b32.xlu0 %v1036, 20
        %v1319 = vpop.permute.xlu0 %1318
        %1320 = vrot.lane.b32.xlu0 %v1039, 20
        %v1321 = vpop.permute.xlu0 %1320
        %1326 = vrot.lane.b32.xlu0 %v1157, 24
        %v1327 = vpop.permute.xlu0 %1326
        %1328 = vrot.lane.b32.xlu0 %v1160, 24
        %v1329 = vpop.permute.xlu0 %1328
        %1334 = vrot.lane.b32.xlu0 %v1278, 28
        %v1335 = vpop.permute.xlu0 %1334
        %1336 = vrot.lane.b32.xlu0 %v1281, 28
        %v1337 = vpop.permute.xlu0 %1336
        %v1340 = vsel %vm318, %v431, %v1287
        %v1341 = vsel %vm318, %v434, %v1289
        %vm1342 = vcmask 64512
        %v1343 = vsel %vm1342, %v1340, %v1295
        %v1344 = vsel %vm1342, %v1341, %v1297
        %vm1345 = vcmask 97280
        %v1346 = vsel %vm1345, %v1343, %v1303
        %v1347 = vsel %vm1345, %v1344, %v1305
        %v1348 = vsel %vm366, %v1346, %v1311
        %v1349 = vsel %vm366, %v1347, %v1313
        %vm1350 = vcmask 162816
        %v1351 = vsel %vm1350, %v1348, %v1319
        %v1352 = vsel %vm1350, %v1349, %v1321
        %vm1353 = vcmask 195584
        %v1354 = vsel %vm1353, %v1351, %v1327
        %v1355 = vsel %vm1353, %v1352, %v1329
        %vm1356 = vcmask 228352
        %v1357 = vsel %vm1356, %v1354, %v1335
        %v1358 = vsel %vm1356, %v1355, %v1337
        %v1359 = vpack.c.bf16 %v1358, %v1357
        %v1360 = vld [vmem:[#allocation7] sm:$0xf]
        %v1361 = vld [vmem:[#allocation7 + $0x4] sm:$0xf]
        %v1362 = vld [vmem:[#allocation7 + $0x8] sm:$0xf]
        %v1363 = vld [vmem:[#allocation7 + $0xc] sm:$0xf]
        %v1364 = vld [vmem:[%s3] sm:$0x1]
        %v1366 = vlaneseq
        %v1367 = vshrl.u32 %v1366, 7
        %v1368 = vsub.s32 0, %v1367
        %v1369 = vrot.slane %v1364, %v1368
        %v1375 = vunpack.c.l.b16 %v1360
        %v1376 = vunpack.c.l.b16 %v1361
        %v1377 = vunpack.c.l.b16 %v1362
        %v1378 = vunpack.c.l.b16 %v1363
        %v1379 = vpack.c.b16 %v1376, %v1375
        %v1380 = vpack.c.b16 %v1378, %v1377
        %v1384 = vsel %vm269, %v1359, 0
        %1386 = vmatprep.subr.bf16.mxu0 0
        %1387 = vmatpush1.bf16.msra.mxu0 %v1379
        %1388 = vmatprep.subr.bf16.mxu0 0
        %1389 = vmatpush1.bf16.msra.mxu0 %v1380
        %1390 = vmatprep.subr.bf16.mxu0 0
        %1391 = vmatpush1.bf16.msra.mxu0 0
        %1392 = vmatprep.subr.bf16.mxu0 0
        %1393 = vmatpush1.bf16.msra.mxu0 0
        %1394 = vmatprep.subr.bf16.mxu0 0
        %1395 = vmatpush1.bf16.msra.mxu0 0
        %1396 = vmatprep.subr.bf16.mxu0 0
        %1397 = vmatpush1.bf16.msra.mxu0 0
        %1398 = vmatprep.subr.bf16.mxu0 0
        %1399 = vmatpush1.bf16.msra.mxu0 0
        %1400 = vmatprep.subr.bf16.mxu0 0
        %1401 = vmatpush1.bf16.msra.mxu0 0
        %1402 = vmatprep.subr.bf16.mxu0 0
        %1403 = vmatpush1.bf16.msra.mxu0 0
        %1404 = vmatprep.subr.bf16.mxu0 0
        %1405 = vmatpush1.bf16.msra.mxu0 0
        %1406 = vmatprep.subr.bf16.mxu0 0
        %1407 = vmatpush1.bf16.msra.mxu0 0
        %1408 = vmatprep.subr.bf16.mxu0 0
        %1409 = vmatpush1.bf16.msra.mxu0 0
        %1410 = vmatprep.subr.bf16.mxu0 0
        %1411 = vmatpush1.bf16.msra.mxu0 0
        %1412 = vmatprep.subr.bf16.mxu0 0
        %1413 = vmatpush1.bf16.msra.mxu0 0
        %1414 = vmatprep.subr.bf16.mxu0 0
        %1415 = vmatpush1.bf16.msra.mxu0 0
        %1416 = vmatprep.subr.bf16.mxu0 0
        %1417 = vmatpush1.bf16.msra.mxu0 0
        %1418 = vmatprep.mubr.bf16.mxu0 0
        %1419 = vmatmul.mubr.bf16.gmra.mrb[0].mxu0 %v1384
        %v1420 = vpop.f32.mrb[0].mxu0
        %v1421 = vadd.f32 %v1369, %v1420
        %v1422 = vpop.f32.mrb[0].mxu0
        %v1423 = vpop.f32.mrb[0].mxu0
        %v1424 = vadd.f32 %v1369, %v1423
        %v1425 = vpop.f32.mrb[0].mxu0
        %1426 = vdwg.mxu0
        %1427 = vst.msk [vmem:[%s244] sm:$0xff] %vm269, %v1421
        %1428 = vst.msk [vmem:[%s244 + $0x8] sm:$0xff] %vm269, %v1424
        %s1429 = sand.u32 %s119, 1
        %s1430 = scalar_lea.sflag [#allocation4], %s1429
        %s1431 = sand.u32 %s119, 1
        %s1432 = smul.addr %s1431, 16
        %s1433 = scalar_lea.vmem [#allocation8], %s1432
        // Predicated region
        $region49: #{tpu_custom_call.1} parent=35 // pred_check
          %p1434 = pneg %p129
        $region50: #{tpu_custom_call.1} parent=35 // pred_check_branch
          %1436 = sbr.rel (%p1434) target = $region52
        $region51: #{tpu_custom_call.1} parent=35 // pred_region
          %s1438 = ssub.s32 256, 256
          %1439 = vsyncadd %s1430, %s1438
          %s1440 = smul.addr %s22, 2
          %s1441 = smul.addr %s1440, 128
          %s1442 = scalar_lea.hbm %s4, %s1441
          %s1443 = sshll.u32 %s1433, 4
          %s1444 = int_to_ptr.vmem [resolvable:$true] %s1443
          %1449 = dma.vmem_to_hbm [thread:$0]  %s1444, 256, %s1442, %s1430, 128, 128, 8
        $region52: #{tpu_custom_call.1} parent=35 // pred_fallthru
          _
      $region36: #{tpu_custom_call.1} parent=5 // pred_fallthru
        _
      %p1450 = scmp.le.s32.totalorder 2, %s17
      // Predicated region
      $region53: #{tpu_custom_call.1} parent=5 // pred_check
        %p1451 = pneg %p1450
      $region54: #{tpu_custom_call.1} parent=5 // pred_check_branch
        %1453 = sbr.rel (%p1451) target = $region56
      $region55: #{tpu_custom_call.1} parent=5 // pred_region
        %s1454 = ssub.s32 %s17, 2
        // Predicated region
        $region57: #{tpu_custom_call.1} parent=55 // pred_check
          %p1455 = pneg %p135
        $region58: #{tpu_custom_call.1} parent=55 // pred_check_branch
          %1457 = sbr.rel (%p1455) target = $region60
        $region59: #{tpu_custom_call.1} parent=55 // pred_region
          %s1458 = sand.u32 %s120, 1
          %s1459 = scalar_lea.sflag [#allocation4], %s1458
          %s1460 = sand.u32 %s120, 1
          %s1461 = smul.addr %s1460, 16
          %s1462 = scalar_lea.vmem [#allocation8], %s1461
          %1463 = dma.done %s1459, 256
        $region60: #{tpu_custom_call.1} parent=55 // pred_fallthru
          _
      $region56: #{tpu_custom_call.1} parent=5 // pred_fallthru
        _
    $region6: #{tpu_custom_call.1} parent=1 // loop_footer
      %s21 = sadd.s32 1, %s17
    $region7: #{tpu_custom_call.1} parent=1 // loop_footer_branch
      %16 = sbr.rel target = $region3
    $region8: #{tpu_custom_call.1} parent=1 // loop_exit
      _
    %1464 = vsyncpa [#allocation3], 1
    %s1465 = scalar_lea.sflag [#allocation3], 1
    %1466 = vsyncpa %s1465, 1
    %1467 = vsyncpa [#allocation6], 1
    %1468 = vsyncpa [#allocation4], 1
    %s1469 = scalar_lea.sflag [#allocation4], 1
    %1470 = vsyncpa %s1469, 1

</llo_original>
